<compile_context>
chip_gen: v7x
topology: tpu7x:2x2x1
jax: 0.10.0
libtpu: 0.0.40
codegen_flags: <defaults>
</compile_context>

<pallas_src>
import functools

import jax
import jax.numpy as jnp
from jax.experimental import pallas as pl
from jax.experimental.pallas import tpu as pltpu


# ------------------------------- Pallas kernel -------------------------------

def _multi_gcn_kernel(*refs, layer_num, head_num):
    """Fused MultiGraphConvolution forward. No grid: single invocation.

    refs = (node_ref, edge_ref, adj_ref, we_ref,
            wn_ref[0], ..., wn_ref[H*L-1],          # index = h * layer_num + l
            wlin_ref, blin_ref, out_ref)
    """
    H, L = head_num, layer_num
    node_ref, edge_ref, adj_ref, we_ref = refs[:4]
    wn_refs = refs[4:4 + H * L]
    wlin_ref, blin_ref, out_ref = refs[4 + H * L:]

    f32 = jnp.float32
    node_feat = node_ref[...]                                   # (N, D)
    ghd = wn_refs[0].shape[-1]

    # ---- edge branch (hoisted): mean over neighbors once, then ONE lane-dense
    # matmul producing the edge term of every (head, layer) GraphConv at once.
    edge_mean = jnp.mean(edge_ref[...], axis=1)                 # (N, E)
    edge_all = jnp.dot(edge_mean, we_ref[...],
                       preferred_element_type=f32)              # (N, H*L*ghd)

    adj = adj_ref[...]                                          # (H, N, N)

    head_outs = []
    for h in range(H):                                          # static unroll
        adj_h = adj[h]                                          # (N, N)
        # node_weight: row degree with zeros replaced by 1 (as in the module)
        deg_h = jnp.sum(adj_h, axis=1, keepdims=True)           # (N, 1)
        deg_h = jnp.where(deg_h == 0.0, 1.0, deg_h)

        # Running product  ax = A_h @ concat([node_feat, g_0, ..., g_{l-1}]).
        ax = jnp.dot(adj_h, node_feat, preferred_element_type=f32)   # (N, D)
        g_list = []
        for l in range(L):                                      # static unroll
            idx = h * L + l
            node_term = jnp.dot(ax, wn_refs[idx][...],
                                preferred_element_type=f32)     # (N, ghd)
            edge_term = edge_all[:, idx * ghd:(idx + 1) * ghd]  # (N, ghd)
            g = jnp.maximum((edge_term + node_term) / deg_h, 0.0)
            g_list.append(g)
            if l + 1 < L:
                # A_h @ concat([x, g]) == concat([A_h @ x, A_h @ g]):
                # only the new ghd columns go through the adjacency.
                ag = jnp.dot(adj_h, g, preferred_element_type=f32)
                ax = jnp.concatenate([ax, ag], axis=-1)

        # TODO(synk): training-mode Dropout(0.2) not implemented (inference only).
        head_outs.append(jnp.concatenate(g_list, axis=-1) + node_feat)

    feats = jnp.concatenate(head_outs, axis=-1)                 # (N, H*hidden)
    out = jnp.dot(feats, wlin_ref[...],
                  preferred_element_type=f32) + blin_ref[...]   # (N, out_dim)
    out_ref[...] = out.astype(out_ref.dtype)


# ------------------------------ wrapper / caller ------------------------------

def multi_graph_convolution(node_feat, edge_feat, adj_stack, params, *,
                            layer_num, head_num):
    """node_feat: (N, D), edge_feat: (N, N, E=D), adj_stack: (H, N, N)."""
    N, _ = node_feat.shape
    out_dim = params["w_lin"].shape[-1]
    n_gc = head_num * layer_num

    # Stack every GraphConv's edge weight along N -> one lane-dense matmul.
    we_all = jnp.concatenate([params["we"][i] for i in range(n_gc)], axis=-1)
    wn_list = [params["wn"][i] for i in range(n_gc)]

    kernel = functools.partial(_multi_gcn_kernel,
                               layer_num=layer_num, head_num=head_num)
    n_inputs = 4 + n_gc + 2
    vmem = pl.BlockSpec(memory_space=pltpu.MemorySpace.VMEM)
    return pl.pallas_call(
        kernel,
        out_shape=jax.ShapeDtypeStruct((N, out_dim), jnp.float32),
        in_specs=[vmem] * n_inputs,
        out_specs=vmem,
    )(node_feat, edge_feat, adj_stack, we_all, *wn_list,
      params["w_lin"], params["b_lin"])


# --------------------------- deterministic parameters -------------------------

def init_params(key, input_dim, output_dim, layer_num, head_num):
    """xavier_uniform_ GraphConv weights + Linear-style init, all float32."""
    ghd = output_dim // layer_num
    assert ghd * layer_num == output_dim
    we_list, wn_list = [], []
    for _h in range(head_num):
        for l in range(layer_num):
            key, k_e, k_n = jax.random.split(key, 3)
            d_in = input_dim + ghd * l
            lim_e = (6.0 / (input_dim + ghd)) ** 0.5
            lim_n = (6.0 / (d_in + ghd)) ** 0.5
            we_list.append(jax.random.uniform(k_e, (input_dim, ghd), jnp.float32,
                                              -lim_e, lim_e))
            wn_list.append(jax.random.uniform(k_n, (d_in, ghd), jnp.float32,
                                              -lim_n, lim_n))
    key, k_w, k_b = jax.random.split(key, 3)
    fan_in = output_dim * head_num
    lim = 1.0 / (fan_in ** 0.5)
    # Linear weight stored pre-transposed: (in_features, out_features).
    w_lin = jax.random.uniform(k_w, (fan_in, output_dim), jnp.float32, -lim, lim)
    b_lin = jax.random.uniform(k_b, (1, output_dim), jnp.float32, -lim, lim)
    return dict(we=we_list, wn=wn_list, w_lin=w_lin, b_lin=b_lin)


# ------------------------------ pure-JAX reference ----------------------------

def multi_graph_convolution_reference(node_feat, edge_feat, adj_stack, params, *,
                                      layer_num, head_num):
    """Direct mirror of the PyTorch module's forward (eval mode)."""
    feat_heads = []
    for h in range(head_num):
        adj_h = adj_stack[h]
        outputs = node_feat
        cache = [outputs]
        out_list = []
        for l in range(layer_num):
            idx = h * layer_num + l
            oe = jnp.einsum("ijk,kp->ijp", edge_feat, params["we"][idx])
            oe = jnp.mean(oe, axis=1)
            on = (adj_h @ outputs) @ params["wn"][idx]
            o = oe + on
            nw = jnp.sum(adj_h, axis=1)
            nw = nw + (nw == 0).astype(jnp.float32)
            g = jax.nn.relu(o / nw[:, None])
            cache.append(g)
            outputs = jnp.concatenate(cache, axis=-1)
            out_list.append(g)           # Dropout(0.2) -> identity in eval
        feat_heads.append(jnp.concatenate(out_list, axis=-1) + node_feat)
    feats = jnp.concatenate(feat_heads, axis=-1)
    return feats @ params["w_lin"] + params["b_lin"]


# ------------------------------------ main ------------------------------------

if __name__ == "__main__":
    # MultiGraphConvolution(layer_num=2, head_num=2, input_dim=64, output_dim=64)
    layer_num, head_num = 2, 2
    num_entity = 32
    input_dim = 64      # edge_dim == input_dim in the module's constructor
    output_dim = 64     # residual `+ node_feat` requires output_dim == input_dim

    key = jax.random.PRNGKey(0)
    k_node, k_edge, k_adj, k_par = jax.random.split(key, 4)
    node_feat = jax.random.normal(k_node, (num_entity, input_dim), jnp.float32)
    edge_feat = jax.random.normal(k_edge, (num_entity, num_entity, input_dim),
                                  jnp.float32)
    adj = (jax.random.uniform(k_adj, (head_num, num_entity, num_entity))
           < 0.3).astype(jnp.float32)
    adj = adj.at[0, 0, :].set(0.0)   # exercise the zero-degree (deg==0 -> 1) path

    params = init_params(k_par, input_dim, output_dim, layer_num, head_num)

    fwd = functools.partial(multi_graph_convolution,
                            layer_num=layer_num, head_num=head_num)
    out = jax.jit(fwd)(node_feat, edge_feat, adj, params)
    out = jax.block_until_ready(out)
    assert out.shape == (num_entity, output_dim), out.shape

    ref = multi_graph_convolution_reference(
        node_feat, edge_feat, adj, params,
        layer_num=layer_num, head_num=head_num)
    max_err = float(jnp.max(jnp.abs(out - ref)))
    assert jnp.allclose(out, ref, rtol=1e-4, atol=1e-4), max_err

    print("KERNEL_OK")
</pallas_src>

<mosaic_0001>
module attributes {stable_mosaic.version = 11 : i64} {
  func.func @_multi_gcn_kernel(%arg0: memref<32x64xf32, #tpu.memory_space<vmem>>, %arg1: memref<32x32x64xf32, #tpu.memory_space<vmem>>, %arg2: memref<2x32x32xf32, #tpu.memory_space<vmem>>, %arg3: memref<64x128xf32, #tpu.memory_space<vmem>>, %arg4: memref<64x32xf32, #tpu.memory_space<vmem>>, %arg5: memref<96x32xf32, #tpu.memory_space<vmem>>, %arg6: memref<64x32xf32, #tpu.memory_space<vmem>>, %arg7: memref<96x32xf32, #tpu.memory_space<vmem>>, %arg8: memref<128x64xf32, #tpu.memory_space<vmem>>, %arg9: memref<1x64xf32, #tpu.memory_space<vmem>>, %arg10: memref<32x64xf32, #tpu.memory_space<vmem>>) attributes {dimension_semantics = [], scalar_prefetch = 0 : i64, scratch_operands = 0 : i64, tpu.core_type = #tpu.core_type<tc>} {
    %c0 = arith.constant 0 : index
    %c0_0 = arith.constant 0 : index
    %0 = vector.load %arg0[%c0, %c0_0] : memref<32x64xf32, #tpu.memory_space<vmem>>, vector<32x64xf32>
    %c0_1 = arith.constant 0 : index
    %c0_2 = arith.constant 0 : index
    %c0_3 = arith.constant 0 : index
    %1 = vector.load %arg1[%c0_1, %c0_2, %c0_3] : memref<32x32x64xf32, #tpu.memory_space<vmem>>, vector<32x32x64xf32>
    %cst = arith.constant dense<0.000000e+00> : vector<32x64xf32>
    %2 = vector.multi_reduction <add>, %1, %cst [1] : vector<32x32x64xf32> to vector<32x64xf32>
    %cst_4 = arith.constant 3.200000e+01 : f32
    %3 = vector.broadcast %cst_4 : f32 to vector<32x64xf32>
    %4 = arith.divf %2, %3 : vector<32x64xf32>
    %c0_5 = arith.constant 0 : index
    %c0_6 = arith.constant 0 : index
    %5 = vector.load %arg3[%c0_5, %c0_6] : memref<64x128xf32, #tpu.memory_space<vmem>>, vector<64x128xf32>
    %cst_7 = arith.constant dense<0.000000e+00> : vector<32x128xf32>
    %6 = tpu.matmul %4, %5, %cst_7 {dimension_numbers = #tpu.dot_dimension_numbers<[1], [0], [0], [1], [0, 0, 1, 1], [], []>} : vector<32x64xf32>, vector<64x128xf32>, vector<32x128xf32> -> vector<32x128xf32>
    %c0_8 = arith.constant 0 : index
    %c0_9 = arith.constant 0 : index
    %c0_10 = arith.constant 0 : index
    %7 = vector.load %arg2[%c0_8, %c0_9, %c0_10] : memref<2x32x32xf32, #tpu.memory_space<vmem>>, vector<2x32x32xf32>
    %8 = vector.extract_strided_slice %7 {offsets = [0, 0, 0], sizes = [1, 32, 32], strides = [1, 1, 1]} : vector<2x32x32xf32> to vector<1x32x32xf32>
    %9 = vector.shape_cast %8 : vector<1x32x32xf32> to vector<32x32xf32>
    %cst_11 = arith.constant dense<0.000000e+00> : vector<32xf32>
    %10 = vector.multi_reduction <add>, %9, %cst_11 [1] : vector<32x32xf32> to vector<32xf32>
    %11 = vector.shape_cast %10 : vector<32xf32> to vector<32x1xf32>
    %cst_12 = arith.constant 0.000000e+00 : f32
    %12 = vector.broadcast %cst_12 : f32 to vector<32x1xf32>
    %13 = arith.cmpf oeq, %11, %12 : vector<32x1xf32>
    %cst_13 = arith.constant 1.000000e+00 : f32
    %14 = vector.broadcast %cst_13 : f32 to vector<32x1xf32>
    %15 = arith.select %13, %14, %11 : vector<32x1xi1>, vector<32x1xf32>
    %cst_14 = arith.constant dense<0.000000e+00> : vector<32x64xf32>
    %16 = tpu.matmul %9, %0, %cst_14 {dimension_numbers = #tpu.dot_dimension_numbers<[1], [0], [0], [1], [0, 0, 1, 1], [], []>} : vector<32x32xf32>, vector<32x64xf32>, vector<32x64xf32> -> vector<32x64xf32>
    %c0_15 = arith.constant 0 : index
    %c0_16 = arith.constant 0 : index
    %17 = vector.load %arg4[%c0_15, %c0_16] : memref<64x32xf32, #tpu.memory_space<vmem>>, vector<64x32xf32>
    %cst_17 = arith.constant dense<0.000000e+00> : vector<32x32xf32>
    %18 = tpu.matmul %16, %17, %cst_17 {dimension_numbers = #tpu.dot_dimension_numbers<[1], [0], [0], [1], [0, 0, 1, 1], [], []>} : vector<32x64xf32>, vector<64x32xf32>, vector<32x32xf32> -> vector<32x32xf32>
    %19 = vector.extract_strided_slice %6 {offsets = [0, 0], sizes = [32, 32], strides = [1, 1]} : vector<32x128xf32> to vector<32x32xf32>
    %20 = arith.addf %19, %18 : vector<32x32xf32>
    %21 = vector.broadcast %15 : vector<32x1xf32> to vector<32x32xf32>
    %22 = arith.divf %20, %21 : vector<32x32xf32>
    %cst_18 = arith.constant 0.000000e+00 : f32
    %23 = vector.broadcast %cst_18 : f32 to vector<32x32xf32>
    %24 = arith.maximumf %22, %23 : vector<32x32xf32>
    %cst_19 = arith.constant dense<0.000000e+00> : vector<32x32xf32>
    %25 = tpu.matmul %9, %24, %cst_19 {dimension_numbers = #tpu.dot_dimension_numbers<[1], [0], [0], [1], [0, 0, 1, 1], [], []>} : vector<32x32xf32>, vector<32x32xf32>, vector<32x32xf32> -> vector<32x32xf32>
    %26 = tpu.concatenate %16, %25 in 1 : vector<32x64xf32>, vector<32x32xf32> -> vector<32x96xf32>
    %c0_20 = arith.constant 0 : index
    %c0_21 = arith.constant 0 : index
    %27 = vector.load %arg5[%c0_20, %c0_21] : memref<96x32xf32, #tpu.memory_space<vmem>>, vector<96x32xf32>
    %cst_22 = arith.constant dense<0.000000e+00> : vector<32x32xf32>
    %28 = tpu.matmul %26, %27, %cst_22 {dimension_numbers = #tpu.dot_dimension_numbers<[1], [0], [0], [1], [0, 0, 1, 1], [], []>} : vector<32x96xf32>, vector<96x32xf32>, vector<32x32xf32> -> vector<32x32xf32>
    %29 = vector.extract_strided_slice %6 {offsets = [0, 32], sizes = [32, 32], strides = [1, 1]} : vector<32x128xf32> to vector<32x32xf32>
    %30 = arith.addf %29, %28 : vector<32x32xf32>
    %31 = vector.broadcast %15 : vector<32x1xf32> to vector<32x32xf32>
    %32 = arith.divf %30, %31 : vector<32x32xf32>
    %cst_23 = arith.constant 0.000000e+00 : f32
    %33 = vector.broadcast %cst_23 : f32 to vector<32x32xf32>
    %34 = arith.maximumf %32, %33 : vector<32x32xf32>
    %35 = tpu.concatenate %24, %34 in 1 : vector<32x32xf32>, vector<32x32xf32> -> vector<32x64xf32>
    %36 = arith.addf %35, %0 : vector<32x64xf32>
    %37 = vector.extract_strided_slice %7 {offsets = [1, 0, 0], sizes = [1, 32, 32], strides = [1, 1, 1]} : vector<2x32x32xf32> to vector<1x32x32xf32>
    %38 = vector.shape_cast %37 : vector<1x32x32xf32> to vector<32x32xf32>
    %cst_24 = arith.constant dense<0.000000e+00> : vector<32xf32>
    %39 = vector.multi_reduction <add>, %38, %cst_24 [1] : vector<32x32xf32> to vector<32xf32>
    %40 = vector.shape_cast %39 : vector<32xf32> to vector<32x1xf32>
    %cst_25 = arith.constant 0.000000e+00 : f32
    %41 = vector.broadcast %cst_25 : f32 to vector<32x1xf32>
    %42 = arith.cmpf oeq, %40, %41 : vector<32x1xf32>
    %cst_26 = arith.constant 1.000000e+00 : f32
    %43 = vector.broadcast %cst_26 : f32 to vector<32x1xf32>
    %44 = arith.select %42, %43, %40 : vector<32x1xi1>, vector<32x1xf32>
    %cst_27 = arith.constant dense<0.000000e+00> : vector<32x64xf32>
    %45 = tpu.matmul %38, %0, %cst_27 {dimension_numbers = #tpu.dot_dimension_numbers<[1], [0], [0], [1], [0, 0, 1, 1], [], []>} : vector<32x32xf32>, vector<32x64xf32>, vector<32x64xf32> -> vector<32x64xf32>
    %c0_28 = arith.constant 0 : index
    %c0_29 = arith.constant 0 : index
    %46 = vector.load %arg6[%c0_28, %c0_29] : memref<64x32xf32, #tpu.memory_space<vmem>>, vector<64x32xf32>
    %cst_30 = arith.constant dense<0.000000e+00> : vector<32x32xf32>
    %47 = tpu.matmul %45, %46, %cst_30 {dimension_numbers = #tpu.dot_dimension_numbers<[1], [0], [0], [1], [0, 0, 1, 1], [], []>} : vector<32x64xf32>, vector<64x32xf32>, vector<32x32xf32> -> vector<32x32xf32>
    %48 = vector.extract_strided_slice %6 {offsets = [0, 64], sizes = [32, 32], strides = [1, 1]} : vector<32x128xf32> to vector<32x32xf32>
    %49 = arith.addf %48, %47 : vector<32x32xf32>
    %50 = vector.broadcast %44 : vector<32x1xf32> to vector<32x32xf32>
    %51 = arith.divf %49, %50 : vector<32x32xf32>
    %cst_31 = arith.constant 0.000000e+00 : f32
    %52 = vector.broadcast %cst_31 : f32 to vector<32x32xf32>
    %53 = arith.maximumf %51, %52 : vector<32x32xf32>
    %cst_32 = arith.constant dense<0.000000e+00> : vector<32x32xf32>
    %54 = tpu.matmul %38, %53, %cst_32 {dimension_numbers = #tpu.dot_dimension_numbers<[1], [0], [0], [1], [0, 0, 1, 1], [], []>} : vector<32x32xf32>, vector<32x32xf32>, vector<32x32xf32> -> vector<32x32xf32>
    %55 = tpu.concatenate %45, %54 in 1 : vector<32x64xf32>, vector<32x32xf32> -> vector<32x96xf32>
    %c0_33 = arith.constant 0 : index
    %c0_34 = arith.constant 0 : index
    %56 = vector.load %arg7[%c0_33, %c0_34] : memref<96x32xf32, #tpu.memory_space<vmem>>, vector<96x32xf32>
    %cst_35 = arith.constant dense<0.000000e+00> : vector<32x32xf32>
    %57 = tpu.matmul %55, %56, %cst_35 {dimension_numbers = #tpu.dot_dimension_numbers<[1], [0], [0], [1], [0, 0, 1, 1], [], []>} : vector<32x96xf32>, vector<96x32xf32>, vector<32x32xf32> -> vector<32x32xf32>
    %58 = vector.extract_strided_slice %6 {offsets = [0, 96], sizes = [32, 32], strides = [1, 1]} : vector<32x128xf32> to vector<32x32xf32>
    %59 = arith.addf %58, %57 : vector<32x32xf32>
    %60 = vector.broadcast %44 : vector<32x1xf32> to vector<32x32xf32>
    %61 = arith.divf %59, %60 : vector<32x32xf32>
    %cst_36 = arith.constant 0.000000e+00 : f32
    %62 = vector.broadcast %cst_36 : f32 to vector<32x32xf32>
    %63 = arith.maximumf %61, %62 : vector<32x32xf32>
    %64 = tpu.concatenate %53, %63 in 1 : vector<32x32xf32>, vector<32x32xf32> -> vector<32x64xf32>
    %65 = arith.addf %64, %0 : vector<32x64xf32>
    %66 = tpu.concatenate %36, %65 in 1 : vector<32x64xf32>, vector<32x64xf32> -> vector<32x128xf32>
    %c0_37 = arith.constant 0 : index
    %c0_38 = arith.constant 0 : index
    %67 = vector.load %arg8[%c0_37, %c0_38] : memref<128x64xf32, #tpu.memory_space<vmem>>, vector<128x64xf32>
    %cst_39 = arith.constant dense<0.000000e+00> : vector<32x64xf32>
    %68 = tpu.matmul %66, %67, %cst_39 {dimension_numbers = #tpu.dot_dimension_numbers<[1], [0], [0], [1], [0, 0, 1, 1], [], []>} : vector<32x128xf32>, vector<128x64xf32>, vector<32x64xf32> -> vector<32x64xf32>
    %c0_40 = arith.constant 0 : index
    %c0_41 = arith.constant 0 : index
    %69 = vector.load %arg9[%c0_40, %c0_41] : memref<1x64xf32, #tpu.memory_space<vmem>>, vector<1x64xf32>
    %70 = vector.broadcast %69 : vector<1x64xf32> to vector<32x64xf32>
    %71 = arith.addf %68, %70 : vector<32x64xf32>
    %c0_42 = arith.constant 0 : index
    %c0_43 = arith.constant 0 : index
    %72 = vector.load %arg10[%c0_42, %c0_43] : memref<32x64xf32, #tpu.memory_space<vmem>>, vector<32x64xf32>
    tpu.vector_store %arg10[%c0_42, %c0_43], %71 {strides = array<i32>} : memref<32x64xf32, #tpu.memory_space<vmem>>, vector<32x64xf32>,
    return
  }
}

</mosaic_0001>

<llo_original>
// kernel: multi_graph_convolution.1
$region0: #{multi_graph_convolution.1}
  #allocation0 [shape = 'u32[]', space=smem, size = 0x4, offset = 0x4, fixed_abs, tag = 'smem constant byte address 0x4 - core index']
  #allocation1 [shape = 'u32[144,128]{1,0:T(1,128)}', space=vmem, size = 0x12000, scoped, tag = 'internal scratch']
  %s0 = inlined_call_operand.vmem [shape: f32[32,64], index: 0, kind: input, shape index: {}]
  %s1 = inlined_call_operand.vmem [shape: f32[32,32,64], index: 1, kind: input, shape index: {}]
  %s2 = inlined_call_operand.vmem [shape: f32[2,32,32], index: 2, kind: input, shape index: {}]
  %s3 = inlined_call_operand.vmem [shape: f32[64,128], index: 3, kind: input, shape index: {}]
  %s4 = inlined_call_operand.vmem [shape: f32[64,32], index: 4, kind: input, shape index: {}]
  %s5 = inlined_call_operand.vmem [shape: f32[96,32], index: 5, kind: input, shape index: {}]
  %s6 = inlined_call_operand.vmem [shape: f32[64,32], index: 6, kind: input, shape index: {}]
  %s7 = inlined_call_operand.vmem [shape: f32[96,32], index: 7, kind: input, shape index: {}]
  %s8 = inlined_call_operand.vmem [shape: f32[128,64], index: 8, kind: input, shape index: {}]
  %s9 = inlined_call_operand.vmem [shape: f32[1,64], index: 9, kind: input, shape index: {}]
  %s10 = inlined_call_operand.hbm [shape: f32[32,64], index: 10, kind: output, shape index: {}]
  %s11 = sld [smem:[#allocation0]]
  $region50: #{multi_graph_convolution.1} parent=0
    _
  %s13 = ssub.s32 1, %s11
  %s14 = scalar_select 0, %s13, %s11
  $region1: #{multi_graph_convolution.1} parent=0
    #allocation2 [shape = 'u8[16384]{0}', space=vmem, size = 0x4000, scoped, tag = 'output window, operand 0, single buffered']
    #allocation3 [shape = 's32[1]{0}', space=sflag, size = 0x4, scoped, tag = 'scoped memory for multi_graph_convolution.1']
    %15 = vsyncpa [#allocation3], 0
    // Predicated region
    $region2: #{multi_graph_convolution.1} parent=1 // pred_check
      _
    $region3: #{multi_graph_convolution.1} parent=1 // pred_check_branch
      %17 = sbr.rel (0) target = $region5
    $region4: #{multi_graph_convolution.1} parent=1 // pred_region
      _
    $region5: #{multi_graph_convolution.1} parent=1 // pred_fallthru
      _
    // Predicated region
    $region6: #{multi_graph_convolution.1} parent=1 // pred_check
      _
    $region7: #{multi_graph_convolution.1} parent=1 // pred_check_branch
      %19 = sbr.rel (0) target = $region9
    $region8: #{multi_graph_convolution.1} parent=1 // pred_region
      _
    $region9: #{multi_graph_convolution.1} parent=1 // pred_fallthru
      _
    // Predicated region
    $region10: #{multi_graph_convolution.1} parent=1 // pred_check
      _
    $region11: #{multi_graph_convolution.1} parent=1 // pred_check_branch
      %21 = sbr.rel (0) target = $region13
    $region12: #{multi_graph_convolution.1} parent=1 // pred_region
      _
    $region13: #{multi_graph_convolution.1} parent=1 // pred_fallthru
      _
    // Predicated region
    $region14: #{multi_graph_convolution.1} parent=1 // pred_check
      _
    $region15: #{multi_graph_convolution.1} parent=1 // pred_check_branch
      %23 = sbr.rel (0) target = $region17
    $region16: #{multi_graph_convolution.1} parent=1 // pred_region
      _
    $region17: #{multi_graph_convolution.1} parent=1 // pred_fallthru
      _
    // Predicated region
    $region18: #{multi_graph_convolution.1} parent=1 // pred_check
      _
    $region19: #{multi_graph_convolution.1} parent=1 // pred_check_branch
      %25 = sbr.rel (0) target = $region21
    $region20: #{multi_graph_convolution.1} parent=1 // pred_region
      _
    $region21: #{multi_graph_convolution.1} parent=1 // pred_fallthru
      _
    // Predicated region
    $region22: #{multi_graph_convolution.1} parent=1 // pred_check
      _
    $region23: #{multi_graph_convolution.1} parent=1 // pred_check_branch
      %27 = sbr.rel (0) target = $region25
    $region24: #{multi_graph_convolution.1} parent=1 // pred_region
      _
    $region25: #{multi_graph_convolution.1} parent=1 // pred_fallthru
      _
    // Predicated region
    $region26: #{multi_graph_convolution.1} parent=1 // pred_check
      _
    $region27: #{multi_graph_convolution.1} parent=1 // pred_check_branch
      %29 = sbr.rel (0) target = $region29
    $region28: #{multi_graph_convolution.1} parent=1 // pred_region
      _
    $region29: #{multi_graph_convolution.1} parent=1 // pred_fallthru
      _
    // Predicated region
    $region30: #{multi_graph_convolution.1} parent=1 // pred_check
      _
    $region31: #{multi_graph_convolution.1} parent=1 // pred_check_branch
      %31 = sbr.rel (0) target = $region33
    $region32: #{multi_graph_convolution.1} parent=1 // pred_region
      _
    $region33: #{multi_graph_convolution.1} parent=1 // pred_fallthru
      _
    // Predicated region
    $region34: #{multi_graph_convolution.1} parent=1 // pred_check
      _
    $region35: #{multi_graph_convolution.1} parent=1 // pred_check_branch
      %33 = sbr.rel (0) target = $region37
    $region36: #{multi_graph_convolution.1} parent=1 // pred_region
      _
    $region37: #{multi_graph_convolution.1} parent=1 // pred_fallthru
      _
    // Predicated region
    $region38: #{multi_graph_convolution.1} parent=1 // pred_check
      _
    $region39: #{multi_graph_convolution.1} parent=1 // pred_check_branch
      %35 = sbr.rel (0) target = $region41
    $region40: #{multi_graph_convolution.1} parent=1 // pred_region
      _
    $region41: #{multi_graph_convolution.1} parent=1 // pred_fallthru
      _
    %v36 = vld [vmem:[%s0] sm:$0xff]
    %v37 = vld [vmem:[%s0 + $0x8] sm:$0xff]
    %v38 = vld [vmem:[%s0 + $0x10] sm:$0xff]
    %v39 = vld [vmem:[%s0 + $0x18] sm:$0xff]
    %v40 = vld [vmem:[%s1] sm:$0xff]
    %v41 = vld [vmem:[%s1 + $0x8] sm:$0xff]
    %v42 = vld [vmem:[%s1 + $0x10] sm:$0xff]
    %v43 = vld [vmem:[%s1 + $0x18] sm:$0xff]
    %v44 = vld [vmem:[%s1 + $0x20] sm:$0xff]
    %v45 = vld [vmem:[%s1 + $0x28] sm:$0xff]
    %v46 = vld [vmem:[%s1 + $0x30] sm:$0xff]
    %v47 = vld [vmem:[%s1 + $0x38] sm:$0xff]
    %v48 = vld [vmem:[%s1 + $0x40] sm:$0xff]
    %v49 = vld [vmem:[%s1 + $0x48] sm:$0xff]
    %v50 = vld [vmem:[%s1 + $0x50] sm:$0xff]
    %v51 = vld [vmem:[%s1 + $0x58] sm:$0xff]
    %v52 = vld [vmem:[%s1 + $0x60] sm:$0xff]
    %v53 = vld [vmem:[%s1 + $0x68] sm:$0xff]
    %v54 = vld [vmem:[%s1 + $0x70] sm:$0xff]
    %v55 = vld [vmem:[%s1 + $0x78] sm:$0xff]
    %v56 = vld [vmem:[%s1 + $0x80] sm:$0xff]
    %v57 = vld [vmem:[%s1 + $0x88] sm:$0xff]
    %v58 = vld [vmem:[%s1 + $0x90] sm:$0xff]
    %v59 = vld [vmem:[%s1 + $0x98] sm:$0xff]
    %v60 = vld [vmem:[%s1 + $0xa0] sm:$0xff]
    %v61 = vld [vmem:[%s1 + $0xa8] sm:$0xff]
    %v62 = vld [vmem:[%s1 + $0xb0] sm:$0xff]
    %v63 = vld [vmem:[%s1 + $0xb8] sm:$0xff]
    %v64 = vld [vmem:[%s1 + $0xc0] sm:$0xff]
    %v65 = vld [vmem:[%s1 + $0xc8] sm:$0xff]
    %v66 = vld [vmem:[%s1 + $0xd0] sm:$0xff]
    %v67 = vld [vmem:[%s1 + $0xd8] sm:$0xff]
    %v68 = vld [vmem:[%s1 + $0xe0] sm:$0xff]
    %v69 = vld [vmem:[%s1 + $0xe8] sm:$0xff]
    %v70 = vld [vmem:[%s1 + $0xf0] sm:$0xff]
    %v71 = vld [vmem:[%s1 + $0xf8] sm:$0xff]
    %v72 = vld [vmem:[%s1 + $0x100] sm:$0xff]
    %v73 = vld [vmem:[%s1 + $0x108] sm:$0xff]
    %v74 = vld [vmem:[%s1 + $0x110] sm:$0xff]
    %v75 = vld [vmem:[%s1 + $0x118] sm:$0xff]
    %v76 = vld [vmem:[%s1 + $0x120] sm:$0xff]
    %v77 = vld [vmem:[%s1 + $0x128] sm:$0xff]
    %v78 = vld [vmem:[%s1 + $0x130] sm:$0xff]
    %v79 = vld [vmem:[%s1 + $0x138] sm:$0xff]
    %v80 = vld [vmem:[%s1 + $0x140] sm:$0xff]
    %v81 = vld [vmem:[%s1 + $0x148] sm:$0xff]
    %v82 = vld [vmem:[%s1 + $0x150] sm:$0xff]
    %v83 = vld [vmem:[%s1 + $0x158] sm:$0xff]
    %v84 = vld [vmem:[%s1 + $0x160] sm:$0xff]
    %v85 = vld [vmem:[%s1 + $0x168] sm:$0xff]
    %v86 = vld [vmem:[%s1 + $0x170] sm:$0xff]
    %v87 = vld [vmem:[%s1 + $0x178] sm:$0xff]
    %v88 = vld [vmem:[%s1 + $0x180] sm:$0xff]
    %v89 = vld [vmem:[%s1 + $0x188] sm:$0xff]
    %v90 = vld [vmem:[%s1 + $0x190] sm:$0xff]
    %v91 = vld [vmem:[%s1 + $0x198] sm:$0xff]
    %v92 = vld [vmem:[%s1 + $0x1a0] sm:$0xff]
    %v93 = vld [vmem:[%s1 + $0x1a8] sm:$0xff]
    %v94 = vld [vmem:[%s1 + $0x1b0] sm:$0xff]
    %v95 = vld [vmem:[%s1 + $0x1b8] sm:$0xff]
    %v96 = vld [vmem:[%s1 + $0x1c0] sm:$0xff]
    %v97 = vld [vmem:[%s1 + $0x1c8] sm:$0xff]
    %v98 = vld [vmem:[%s1 + $0x1d0] sm:$0xff]
    %v99 = vld [vmem:[%s1 + $0x1d8] sm:$0xff]
    %v100 = vld [vmem:[%s1 + $0x1e0] sm:$0xff]
    %v101 = vld [vmem:[%s1 + $0x1e8] sm:$0xff]
    %v102 = vld [vmem:[%s1 + $0x1f0] sm:$0xff]
    %v103 = vld [vmem:[%s1 + $0x1f8] sm:$0xff]
    %v104 = vld [vmem:[%s1 + $0x200] sm:$0xff]
    %v105 = vld [vmem:[%s1 + $0x208] sm:$0xff]
    %v106 = vld [vmem:[%s1 + $0x210] sm:$0xff]
    %v107 = vld [vmem:[%s1 + $0x218] sm:$0xff]
    %v108 = vld [vmem:[%s1 + $0x220] sm:$0xff]
    %v109 = vld [vmem:[%s1 + $0x228] sm:$0xff]
    %v110 = vld [vmem:[%s1 + $0x230] sm:$0xff]
    %v111 = vld [vmem:[%s1 + $0x238] sm:$0xff]
    %v112 = vld [vmem:[%s1 + $0x240] sm:$0xff]
    %v113 = vld [vmem:[%s1 + $0x248] sm:$0xff]
    %v114 = vld [vmem:[%s1 + $0x250] sm:$0xff]
    %v115 = vld [vmem:[%s1 + $0x258] sm:$0xff]
    %v116 = vld [vmem:[%s1 + $0x260] sm:$0xff]
    %v117 = vld [vmem:[%s1 + $0x268] sm:$0xff]
    %v118 = vld [vmem:[%s1 + $0x270] sm:$0xff]
    %v119 = vld [vmem:[%s1 + $0x278] sm:$0xff]
    %v120 = vld [vmem:[%s1 + $0x280] sm:$0xff]
    %v121 = vld [vmem:[%s1 + $0x288] sm:$0xff]
    %v122 = vld [vmem:[%s1 + $0x290] sm:$0xff]
    %v123 = vld [vmem:[%s1 + $0x298] sm:$0xff]
    %v124 = vld [vmem:[%s1 + $0x2a0] sm:$0xff]
    %v125 = vld [vmem:[%s1 + $0x2a8] sm:$0xff]
    %v126 = vld [vmem:[%s1 + $0x2b0] sm:$0xff]
    %v127 = vld [vmem:[%s1 + $0x2b8] sm:$0xff]
    %v128 = vld [vmem:[%s1 + $0x2c0] sm:$0xff]
    %v129 = vld [vmem:[%s1 + $0x2c8] sm:$0xff]
    %v130 = vld [vmem:[%s1 + $0x2d0] sm:$0xff]
    %v131 = vld [vmem:[%s1 + $0x2d8] sm:$0xff]
    %v132 = vld [vmem:[%s1 + $0x2e0] sm:$0xff]
    %v133 = vld [vmem:[%s1 + $0x2e8] sm:$0xff]
    %v134 = vld [vmem:[%s1 + $0x2f0] sm:$0xff]
    %v135 = vld [vmem:[%s1 + $0x2f8] sm:$0xff]
    %v136 = vld [vmem:[%s1 + $0x300] sm:$0xff]
    %v137 = vld [vmem:[%s1 + $0x308] sm:$0xff]
    %v138 = vld [vmem:[%s1 + $0x310] sm:$0xff]
    %v139 = vld [vmem:[%s1 + $0x318] sm:$0xff]
    %v140 = vld [vmem:[%s1 + $0x320] sm:$0xff]
    %v141 = vld [vmem:[%s1 + $0x328] sm:$0xff]
    %v142 = vld [vmem:[%s1 + $0x330] sm:$0xff]
    %v143 = vld [vmem:[%s1 + $0x338] sm:$0xff]
    %v144 = vld [vmem:[%s1 + $0x340] sm:$0xff]
    %v145 = vld [vmem:[%s1 + $0x348] sm:$0xff]
    %v146 = vld [vmem:[%s1 + $0x350] sm:$0xff]
    %v147 = vld [vmem:[%s1 + $0x358] sm:$0xff]
    %v148 = vld [vmem:[%s1 + $0x360] sm:$0xff]
    %v149 = vld [vmem:[%s1 + $0x368] sm:$0xff]
    %v150 = vld [vmem:[%s1 + $0x370] sm:$0xff]
    %v151 = vld [vmem:[%s1 + $0x378] sm:$0xff]
    %v152 = vld [vmem:[%s1 + $0x380] sm:$0xff]
    %v153 = vld [vmem:[%s1 + $0x388] sm:$0xff]
    %v154 = vld [vmem:[%s1 + $0x390] sm:$0xff]
    %v155 = vld [vmem:[%s1 + $0x398] sm:$0xff]
    %v156 = vld [vmem:[%s1 + $0x3a0] sm:$0xff]
    %v157 = vld [vmem:[%s1 + $0x3a8] sm:$0xff]
    %v158 = vld [vmem:[%s1 + $0x3b0] sm:$0xff]
    %v159 = vld [vmem:[%s1 + $0x3b8] sm:$0xff]
    %v160 = vld [vmem:[%s1 + $0x3c0] sm:$0xff]
    %v161 = vld [vmem:[%s1 + $0x3c8] sm:$0xff]
    %v162 = vld [vmem:[%s1 + $0x3d0] sm:$0xff]
    %v163 = vld [vmem:[%s1 + $0x3d8] sm:$0xff]
    %v164 = vld [vmem:[%s1 + $0x3e0] sm:$0xff]
    %v165 = vld [vmem:[%s1 + $0x3e8] sm:$0xff]
    %v166 = vld [vmem:[%s1 + $0x3f0] sm:$0xff]
    %v167 = vld [vmem:[%s1 + $0x3f8] sm:$0xff]
    %vm168 = vcmask 523264
    %v169 = vsel %vm168, %v40, 0.0
    %v170 = vsel %vm168, %v41, 0.0
    %v171 = vadd.f32 %v169, %v170
    %v172 = vsel %vm168, %v42, 0.0
    %v173 = vadd.f32 %v171, %v172
    %v174 = vsel %vm168, %v43, 0.0
    %v175 = vadd.f32 %v173, %v174
    %v176 = vrot.slane %v175, 4
    %v177 = vadd.f32 %v175, %v176
    %v178 = vrot.slane %v177, 2
    %v179 = vadd.f32 %v177, %v178
    %v180 = vrot.slane %v179, 1
    %v181 = vadd.f32 %v179, %v180
    %v182 = vsel %vm168, %v44, 0.0
    %v183 = vsel %vm168, %v45, 0.0
    %v184 = vadd.f32 %v182, %v183
    %v185 = vsel %vm168, %v46, 0.0
    %v186 = vadd.f32 %v184, %v185
    %v187 = vsel %vm168, %v47, 0.0
    %v188 = vadd.f32 %v186, %v187
    %v189 = vrot.slane %v188, 4
    %v190 = vadd.f32 %v188, %v189
    %v191 = vrot.slane %v190, 2
    %v192 = vadd.f32 %v190, %v191
    %v193 = vrot.slane %v192, 1
    %v194 = vadd.f32 %v192, %v193
    %v195 = vsel %vm168, %v48, 0.0
    %v196 = vsel %vm168, %v49, 0.0
    %v197 = vadd.f32 %v195, %v196
    %v198 = vsel %vm168, %v50, 0.0
    %v199 = vadd.f32 %v197, %v198
    %v200 = vsel %vm168, %v51, 0.0
    %v201 = vadd.f32 %v199, %v200
    %v202 = vrot.slane %v201, 4
    %v203 = vadd.f32 %v201, %v202
    %v204 = vrot.slane %v203, 2
    %v205 = vadd.f32 %v203, %v204
    %v206 = vrot.slane %v205, 1
    %v207 = vadd.f32 %v205, %v206
    %v208 = vsel %vm168, %v52, 0.0
    %v209 = vsel %vm168, %v53, 0.0
    %v210 = vadd.f32 %v208, %v209
    %v211 = vsel %vm168, %v54, 0.0
    %v212 = vadd.f32 %v210, %v211
    %v213 = vsel %vm168, %v55, 0.0
    %v214 = vadd.f32 %v212, %v213
    %v215 = vrot.slane %v214, 4
    %v216 = vadd.f32 %v214, %v215
    %v217 = vrot.slane %v216, 2
    %v218 = vadd.f32 %v216, %v217
    %v219 = vrot.slane %v218, 1
    %v220 = vadd.f32 %v218, %v219
    %v221 = vsel %vm168, %v56, 0.0
    %v222 = vsel %vm168, %v57, 0.0
    %v223 = vadd.f32 %v221, %v222
    %v224 = vsel %vm168, %v58, 0.0
    %v225 = vadd.f32 %v223, %v224
    %v226 = vsel %vm168, %v59, 0.0
    %v227 = vadd.f32 %v225, %v226
    %v228 = vrot.slane %v227, 4
    %v229 = vadd.f32 %v227, %v228
    %v230 = vrot.slane %v229, 2
    %v231 = vadd.f32 %v229, %v230
    %v232 = vrot.slane %v231, 1
    %v233 = vadd.f32 %v231, %v232
    %v234 = vsel %vm168, %v60, 0.0
    %v235 = vsel %vm168, %v61, 0.0
    %v236 = vadd.f32 %v234, %v235
    %v237 = vsel %vm168, %v62, 0.0
    %v238 = vadd.f32 %v236, %v237
    %v239 = vsel %vm168, %v63, 0.0
    %v240 = vadd.f32 %v238, %v239
    %v241 = vrot.slane %v240, 4
    %v242 = vadd.f32 %v240, %v241
    %v243 = vrot.slane %v242, 2
    %v244 = vadd.f32 %v242, %v243
    %v245 = vrot.slane %v244, 1
    %v246 = vadd.f32 %v244, %v245
    %v247 = vsel %vm168, %v64, 0.0
    %v248 = vsel %vm168, %v65, 0.0
    %v249 = vadd.f32 %v247, %v248
    %v250 = vsel %vm168, %v66, 0.0
    %v251 = vadd.f32 %v249, %v250
    %v252 = vsel %vm168, %v67, 0.0
    %v253 = vadd.f32 %v251, %v252
    %v254 = vrot.slane %v253, 4
    %v255 = vadd.f32 %v253, %v254
    %v256 = vrot.slane %v255, 2
    %v257 = vadd.f32 %v255, %v256
    %v258 = vrot.slane %v257, 1
    %v259 = vadd.f32 %v257, %v258
    %v260 = vsel %vm168, %v68, 0.0
    %v261 = vsel %vm168, %v69, 0.0
    %v262 = vadd.f32 %v260, %v261
    %v263 = vsel %vm168, %v70, 0.0
    %v264 = vadd.f32 %v262, %v263
    %v265 = vsel %vm168, %v71, 0.0
    %v266 = vadd.f32 %v264, %v265
    %v267 = vrot.slane %v266, 4
    %v268 = vadd.f32 %v266, %v267
    %v269 = vrot.slane %v268, 2
    %v270 = vadd.f32 %v268, %v269
    %v271 = vrot.slane %v270, 1
    %v272 = vadd.f32 %v270, %v271
    %v273 = vsel %vm168, %v72, 0.0
    %v274 = vsel %vm168, %v73, 0.0
    %v275 = vadd.f32 %v273, %v274
    %v276 = vsel %vm168, %v74, 0.0
    %v277 = vadd.f32 %v275, %v276
    %v278 = vsel %vm168, %v75, 0.0
    %v279 = vadd.f32 %v277, %v278
    %v280 = vrot.slane %v279, 4
    %v281 = vadd.f32 %v279, %v280
    %v282 = vrot.slane %v281, 2
    %v283 = vadd.f32 %v281, %v282
    %v284 = vrot.slane %v283, 1
    %v285 = vadd.f32 %v283, %v284
    %v286 = vsel %vm168, %v76, 0.0
    %v287 = vsel %vm168, %v77, 0.0
    %v288 = vadd.f32 %v286, %v287
    %v289 = vsel %vm168, %v78, 0.0
    %v290 = vadd.f32 %v288, %v289
    %v291 = vsel %vm168, %v79, 0.0
    %v292 = vadd.f32 %v290, %v291
    %v293 = vrot.slane %v292, 4
    %v294 = vadd.f32 %v292, %v293
    %v295 = vrot.slane %v294, 2
    %v296 = vadd.f32 %v294, %v295
    %v297 = vrot.slane %v296, 1
    %v298 = vadd.f32 %v296, %v297
    %v299 = vsel %vm168, %v80, 0.0
    %v300 = vsel %vm168, %v81, 0.0
    %v301 = vadd.f32 %v299, %v300
    %v302 = vsel %vm168, %v82, 0.0
    %v303 = vadd.f32 %v301, %v302
    %v304 = vsel %vm168, %v83, 0.0
    %v305 = vadd.f32 %v303, %v304
    %v306 = vrot.slane %v305, 4
    %v307 = vadd.f32 %v305, %v306
    %v308 = vrot.slane %v307, 2
    %v309 = vadd.f32 %v307, %v308
    %v310 = vrot.slane %v309, 1
    %v311 = vadd.f32 %v309, %v310
    %v312 = vsel %vm168, %v84, 0.0
    %v313 = vsel %vm168, %v85, 0.0
    %v314 = vadd.f32 %v312, %v313
    %v315 = vsel %vm168, %v86, 0.0
    %v316 = vadd.f32 %v314, %v315
    %v317 = vsel %vm168, %v87, 0.0
    %v318 = vadd.f32 %v316, %v317
    %v319 = vrot.slane %v318, 4
    %v320 = vadd.f32 %v318, %v319
    %v321 = vrot.slane %v320, 2
    %v322 = vadd.f32 %v320, %v321
    %v323 = vrot.slane %v322, 1
    %v324 = vadd.f32 %v322, %v323
    %v325 = vsel %vm168, %v88, 0.0
    %v326 = vsel %vm168, %v89, 0.0
    %v327 = vadd.f32 %v325, %v326
    %v328 = vsel %vm168, %v90, 0.0
    %v329 = vadd.f32 %v327, %v328
    %v330 = vsel %vm168, %v91, 0.0
    %v331 = vadd.f32 %v329, %v330
    %v332 = vrot.slane %v331, 4
    %v333 = vadd.f32 %v331, %v332
    %v334 = vrot.slane %v333, 2
    %v335 = vadd.f32 %v333, %v334
    %v336 = vrot.slane %v335, 1
    %v337 = vadd.f32 %v335, %v336
    %v338 = vsel %vm168, %v92, 0.0
    %v339 = vsel %vm168, %v93, 0.0
    %v340 = vadd.f32 %v338, %v339
    %v341 = vsel %vm168, %v94, 0.0
    %v342 = vadd.f32 %v340, %v341
    %v343 = vsel %vm168, %v95, 0.0
    %v344 = vadd.f32 %v342, %v343
    %v345 = vrot.slane %v344, 4
    %v346 = vadd.f32 %v344, %v345
    %v347 = vrot.slane %v346, 2
    %v348 = vadd.f32 %v346, %v347
    %v349 = vrot.slane %v348, 1
    %v350 = vadd.f32 %v348, %v349
    %v351 = vsel %vm168, %v96, 0.0
    %v352 = vsel %vm168, %v97, 0.0
    %v353 = vadd.f32 %v351, %v352
    %v354 = vsel %vm168, %v98, 0.0
    %v355 = vadd.f32 %v353, %v354
    %v356 = vsel %vm168, %v99, 0.0
    %v357 = vadd.f32 %v355, %v356
    %v358 = vrot.slane %v357, 4
    %v359 = vadd.f32 %v357, %v358
    %v360 = vrot.slane %v359, 2
    %v361 = vadd.f32 %v359, %v360
    %v362 = vrot.slane %v361, 1
    %v363 = vadd.f32 %v361, %v362
    %v364 = vsel %vm168, %v100, 0.0
    %v365 = vsel %vm168, %v101, 0.0
    %v366 = vadd.f32 %v364, %v365
    %v367 = vsel %vm168, %v102, 0.0
    %v368 = vadd.f32 %v366, %v367
    %v369 = vsel %vm168, %v103, 0.0
    %v370 = vadd.f32 %v368, %v369
    %v371 = vrot.slane %v370, 4
    %v372 = vadd.f32 %v370, %v371
    %v373 = vrot.slane %v372, 2
    %v374 = vadd.f32 %v372, %v373
    %v375 = vrot.slane %v374, 1
    %v376 = vadd.f32 %v374, %v375
    %v377 = vsel %vm168, %v104, 0.0
    %v378 = vsel %vm168, %v105, 0.0
    %v379 = vadd.f32 %v377, %v378
    %v380 = vsel %vm168, %v106, 0.0
    %v381 = vadd.f32 %v379, %v380
    %v382 = vsel %vm168, %v107, 0.0
    %v383 = vadd.f32 %v381, %v382
    %v384 = vrot.slane %v383, 4
    %v385 = vadd.f32 %v383, %v384
    %v386 = vrot.slane %v385, 2
    %v387 = vadd.f32 %v385, %v386
    %v388 = vrot.slane %v387, 1
    %v389 = vadd.f32 %v387, %v388
    %v390 = vsel %vm168, %v108, 0.0
    %v391 = vsel %vm168, %v109, 0.0
    %v392 = vadd.f32 %v390, %v391
    %v393 = vsel %vm168, %v110, 0.0
    %v394 = vadd.f32 %v392, %v393
    %v395 = vsel %vm168, %v111, 0.0
    %v396 = vadd.f32 %v394, %v395
    %v397 = vrot.slane %v396, 4
    %v398 = vadd.f32 %v396, %v397
    %v399 = vrot.slane %v398, 2
    %v400 = vadd.f32 %v398, %v399
    %v401 = vrot.slane %v400, 1
    %v402 = vadd.f32 %v400, %v401
    %v403 = vsel %vm168, %v112, 0.0
    %v404 = vsel %vm168, %v113, 0.0
    %v405 = vadd.f32 %v403, %v404
    %v406 = vsel %vm168, %v114, 0.0
    %v407 = vadd.f32 %v405, %v406
    %v408 = vsel %vm168, %v115, 0.0
    %v409 = vadd.f32 %v407, %v408
    %v410 = vrot.slane %v409, 4
    %v411 = vadd.f32 %v409, %v410
    %v412 = vrot.slane %v411, 2
    %v413 = vadd.f32 %v411, %v412
    %v414 = vrot.slane %v413, 1
    %v415 = vadd.f32 %v413, %v414
    %v416 = vsel %vm168, %v116, 0.0
    %v417 = vsel %vm168, %v117, 0.0
    %v418 = vadd.f32 %v416, %v417
    %v419 = vsel %vm168, %v118, 0.0
    %v420 = vadd.f32 %v418, %v419
    %v421 = vsel %vm168, %v119, 0.0
    %v422 = vadd.f32 %v420, %v421
    %v423 = vrot.slane %v422, 4
    %v424 = vadd.f32 %v422, %v423
    %v425 = vrot.slane %v424, 2
    %v426 = vadd.f32 %v424, %v425
    %v427 = vrot.slane %v426, 1
    %v428 = vadd.f32 %v426, %v427
    %v429 = vsel %vm168, %v120, 0.0
    %v430 = vsel %vm168, %v121, 0.0
    %v431 = vadd.f32 %v429, %v430
    %v432 = vsel %vm168, %v122, 0.0
    %v433 = vadd.f32 %v431, %v432
    %v434 = vsel %vm168, %v123, 0.0
    %v435 = vadd.f32 %v433, %v434
    %v436 = vrot.slane %v435, 4
    %v437 = vadd.f32 %v435, %v436
    %v438 = vrot.slane %v437, 2
    %v439 = vadd.f32 %v437, %v438
    %v440 = vrot.slane %v439, 1
    %v441 = vadd.f32 %v439, %v440
    %v442 = vsel %vm168, %v124, 0.0
    %v443 = vsel %vm168, %v125, 0.0
    %v444 = vadd.f32 %v442, %v443
    %v445 = vsel %vm168, %v126, 0.0
    %v446 = vadd.f32 %v444, %v445
    %v447 = vsel %vm168, %v127, 0.0
    %v448 = vadd.f32 %v446, %v447
    %v449 = vrot.slane %v448, 4
    %v450 = vadd.f32 %v448, %v449
    %v451 = vrot.slane %v450, 2
    %v452 = vadd.f32 %v450, %v451
    %v453 = vrot.slane %v452, 1
    %v454 = vadd.f32 %v452, %v453
    %v455 = vsel %vm168, %v128, 0.0
    %v456 = vsel %vm168, %v129, 0.0
    %v457 = vadd.f32 %v455, %v456
    %v458 = vsel %vm168, %v130, 0.0
    %v459 = vadd.f32 %v457, %v458
    %v460 = vsel %vm168, %v131, 0.0
    %v461 = vadd.f32 %v459, %v460
    %v462 = vrot.slane %v461, 4
    %v463 = vadd.f32 %v461, %v462
    %v464 = vrot.slane %v463, 2
    %v465 = vadd.f32 %v463, %v464
    %v466 = vrot.slane %v465, 1
    %v467 = vadd.f32 %v465, %v466
    %v468 = vsel %vm168, %v132, 0.0
    %v469 = vsel %vm168, %v133, 0.0
    %v470 = vadd.f32 %v468, %v469
    %v471 = vsel %vm168, %v134, 0.0
    %v472 = vadd.f32 %v470, %v471
    %v473 = vsel %vm168, %v135, 0.0
    %v474 = vadd.f32 %v472, %v473
    %v475 = vrot.slane %v474, 4
    %v476 = vadd.f32 %v474, %v475
    %v477 = vrot.slane %v476, 2
    %v478 = vadd.f32 %v476, %v477
    %v479 = vrot.slane %v478, 1
    %v480 = vadd.f32 %v478, %v479
    %v481 = vsel %vm168, %v136, 0.0
    %v482 = vsel %vm168, %v137, 0.0
    %v483 = vadd.f32 %v481, %v482
    %v484 = vsel %vm168, %v138, 0.0
    %v485 = vadd.f32 %v483, %v484
    %v486 = vsel %vm168, %v139, 0.0
    %v487 = vadd.f32 %v485, %v486
    %v488 = vrot.slane %v487, 4
    %v489 = vadd.f32 %v487, %v488
    %v490 = vrot.slane %v489, 2
    %v491 = vadd.f32 %v489, %v490
    %v492 = vrot.slane %v491, 1
    %v493 = vadd.f32 %v491, %v492
    %v494 = vsel %vm168, %v140, 0.0
    %v495 = vsel %vm168, %v141, 0.0
    %v496 = vadd.f32 %v494, %v495
    %v497 = vsel %vm168, %v142, 0.0
    %v498 = vadd.f32 %v496, %v497
    %v499 = vsel %vm168, %v143, 0.0
    %v500 = vadd.f32 %v498, %v499
    %v501 = vrot.slane %v500, 4
    %v502 = vadd.f32 %v500, %v501
    %v503 = vrot.slane %v502, 2
    %v504 = vadd.f32 %v502, %v503
    %v505 = vrot.slane %v504, 1
    %v506 = vadd.f32 %v504, %v505
    %v507 = vsel %vm168, %v144, 0.0
    %v508 = vsel %vm168, %v145, 0.0
    %v509 = vadd.f32 %v507, %v508
    %v510 = vsel %vm168, %v146, 0.0
    %v511 = vadd.f32 %v509, %v510
    %v512 = vsel %vm168, %v147, 0.0
    %v513 = vadd.f32 %v511, %v512
    %v514 = vrot.slane %v513, 4
    %v515 = vadd.f32 %v513, %v514
    %v516 = vrot.slane %v515, 2
    %v517 = vadd.f32 %v515, %v516
    %v518 = vrot.slane %v517, 1
    %v519 = vadd.f32 %v517, %v518
    %v520 = vsel %vm168, %v148, 0.0
    %v521 = vsel %vm168, %v149, 0.0
    %v522 = vadd.f32 %v520, %v521
    %v523 = vsel %vm168, %v150, 0.0
    %v524 = vadd.f32 %v522, %v523
    %v525 = vsel %vm168, %v151, 0.0
    %v526 = vadd.f32 %v524, %v525
    %v527 = vrot.slane %v526, 4
    %v528 = vadd.f32 %v526, %v527
    %v529 = vrot.slane %v528, 2
    %v530 = vadd.f32 %v528, %v529
    %v531 = vrot.slane %v530, 1
    %v532 = vadd.f32 %v530, %v531
    %v533 = vsel %vm168, %v152, 0.0
    %v534 = vsel %vm168, %v153, 0.0
    %v535 = vadd.f32 %v533, %v534
    %v536 = vsel %vm168, %v154, 0.0
    %v537 = vadd.f32 %v535, %v536
    %v538 = vsel %vm168, %v155, 0.0
    %v539 = vadd.f32 %v537, %v538
    %v540 = vrot.slane %v539, 4
    %v541 = vadd.f32 %v539, %v540
    %v542 = vrot.slane %v541, 2
    %v543 = vadd.f32 %v541, %v542
    %v544 = vrot.slane %v543, 1
    %v545 = vadd.f32 %v543, %v544
    %v546 = vsel %vm168, %v156, 0.0
    %v547 = vsel %vm168, %v157, 0.0
    %v548 = vadd.f32 %v546, %v547
    %v549 = vsel %vm168, %v158, 0.0
    %v550 = vadd.f32 %v548, %v549
    %v551 = vsel %vm168, %v159, 0.0
    %v552 = vadd.f32 %v550, %v551
    %v553 = vrot.slane %v552, 4
    %v554 = vadd.f32 %v552, %v553
    %v555 = vrot.slane %v554, 2
    %v556 = vadd.f32 %v554, %v555
    %v557 = vrot.slane %v556, 1
    %v558 = vadd.f32 %v556, %v557
    %v559 = vsel %vm168, %v160, 0.0
    %v560 = vsel %vm168, %v161, 0.0
    %v561 = vadd.f32 %v559, %v560
    %v562 = vsel %vm168, %v162, 0.0
    %v563 = vadd.f32 %v561, %v562
    %v564 = vsel %vm168, %v163, 0.0
    %v565 = vadd.f32 %v563, %v564
    %v566 = vrot.slane %v565, 4
    %v567 = vadd.f32 %v565, %v566
    %v568 = vrot.slane %v567, 2
    %v569 = vadd.f32 %v567, %v568
    %v570 = vrot.slane %v569, 1
    %v571 = vadd.f32 %v569, %v570
    %v572 = vsel %vm168, %v164, 0.0
    %v573 = vsel %vm168, %v165, 0.0
    %v574 = vadd.f32 %v572, %v573
    %v575 = vsel %vm168, %v166, 0.0
    %v576 = vadd.f32 %v574, %v575
    %v577 = vsel %vm168, %v167, 0.0
    %v578 = vadd.f32 %v576, %v577
    %v579 = vrot.slane %v578, 4
    %v580 = vadd.f32 %v578, %v579
    %v581 = vrot.slane %v580, 2
    %v582 = vadd.f32 %v580, %v581
    %v583 = vrot.slane %v582, 1
    %v584 = vadd.f32 %v582, %v583
    %v585 = vrcp.pop 32.0
    %v586 = vmul.f32 %v181, %v585
    %v587 = vmul.f32 %v194, %v585
    %v588 = vmul.f32 %v207, %v585
    %v589 = vmul.f32 %v220, %v585
    %v590 = vmul.f32 %v233, %v585
    %v591 = vmul.f32 %v246, %v585
    %v592 = vmul.f32 %v259, %v585
    %v593 = vmul.f32 %v272, %v585
    %v594 = vmul.f32 %v285, %v585
    %v595 = vmul.f32 %v298, %v585
    %v596 = vmul.f32 %v311, %v585
    %v597 = vmul.f32 %v324, %v585
    %v598 = vmul.f32 %v337, %v585
    %v599 = vmul.f32 %v350, %v585
    %v600 = vmul.f32 %v363, %v585
    %v601 = vmul.f32 %v376, %v585
    %v602 = vmul.f32 %v389, %v585
    %v603 = vmul.f32 %v402, %v585
    %v604 = vmul.f32 %v415, %v585
    %v605 = vmul.f32 %v428, %v585
    %v606 = vmul.f32 %v441, %v585
    %v607 = vmul.f32 %v454, %v585
    %v608 = vmul.f32 %v467, %v585
    %v609 = vmul.f32 %v480, %v585
    %v610 = vmul.f32 %v493, %v585
    %v611 = vmul.f32 %v506, %v585
    %v612 = vmul.f32 %v519, %v585
    %v613 = vmul.f32 %v532, %v585
    %v614 = vmul.f32 %v545, %v585
    %v615 = vmul.f32 %v558, %v585
    %v616 = vmul.f32 %v571, %v585
    %v617 = vmul.f32 %v584, %v585
    %v618 = vld [vmem:[%s3] sm:$0xff]
    %v619 = vld [vmem:[%s3 + $0x8] sm:$0xff]
    %v620 = vld [vmem:[%s3 + $0x10] sm:$0xff]
    %v621 = vld [vmem:[%s3 + $0x18] sm:$0xff]
    %v622 = vld [vmem:[%s3 + $0x20] sm:$0xff]
    %v623 = vld [vmem:[%s3 + $0x28] sm:$0xff]
    %v624 = vld [vmem:[%s3 + $0x30] sm:$0xff]
    %v625 = vld [vmem:[%s3 + $0x38] sm:$0xff]
    %vm658 = vcmask 1041409
    %v659 = vsel %vm658, %v587, %v586
    %vm660 = vcmask 1042434
    %v661 = vsel %vm660, %v588, %v659
    %vm662 = vcmask 1043459
    %v663 = vsel %vm662, %v589, %v661
    %vm664 = vcmask 1044484
    %v665 = vsel %vm664, %v590, %v663
    %vm666 = vcmask 1045509
    %v667 = vsel %vm666, %v591, %v665
    %vm668 = vcmask 1046534
    %v669 = vsel %vm668, %v592, %v667
    %vm670 = vcmask 1047559
    %v671 = vsel %vm670, %v593, %v669
    %v672 = vsel %vm658, %v595, %v594
    %v673 = vsel %vm660, %v596, %v672
    %v674 = vsel %vm662, %v597, %v673
    %v675 = vsel %vm664, %v598, %v674
    %v676 = vsel %vm666, %v599, %v675
    %v677 = vsel %vm668, %v600, %v676
    %v678 = vsel %vm670, %v601, %v677
    %v679 = vsel %vm658, %v603, %v602
    %v680 = vsel %vm660, %v604, %v679
    %v681 = vsel %vm662, %v605, %v680
    %v682 = vsel %vm664, %v606, %v681
    %v683 = vsel %vm666, %v607, %v682
    %v684 = vsel %vm668, %v608, %v683
    %v685 = vsel %vm670, %v609, %v684
    %v686 = vsel %vm658, %v611, %v610
    %v687 = vsel %vm660, %v612, %v686
    %v688 = vsel %vm662, %v613, %v687
    %v689 = vsel %vm664, %v614, %v688
    %v690 = vsel %vm666, %v615, %v689
    %v691 = vsel %vm668, %v616, %v690
    %v692 = vsel %vm670, %v617, %v691
    %v693 = vsel %vm168, %v671, 0
    %v695 = vsel %vm168, %v678, 0
    %v697 = vsel %vm168, %v685, 0
    %v699 = vsel %vm168, %v692, 0
    %701 = vmatprep.subr.mxu0 0.0
    %702 = vmatpush1.msra.mxu0 %v618
    %703 = vmatprep.subr.mxu0 0.0
    %704 = vmatpush1.msra.mxu0 %v619
    %705 = vmatprep.subr.mxu0 0.0
    %706 = vmatpush1.msra.mxu0 %v620
    %707 = vmatprep.subr.mxu0 0.0
    %708 = vmatpush1.msra.mxu0 %v621
    %709 = vmatprep.subr.mxu0 0.0
    %710 = vmatpush1.msra.mxu0 %v622
    %711 = vmatprep.subr.mxu0 0.0
    %712 = vmatpush1.msra.mxu0 %v623
    %713 = vmatprep.subr.mxu0 0.0
    %714 = vmatpush1.msra.mxu0 %v624
    %715 = vmatprep.subr.mxu0 0.0
    %716 = vmatpush1.msra.mxu0 %v625
    %717 = vmatprep.subr.mxu0 0.0
    %718 = vmatpush1.msra.mxu0 0.0
    %719 = vmatprep.subr.mxu0 0.0
    %720 = vmatpush1.msra.mxu0 0.0
    %721 = vmatprep.subr.mxu0 0.0
    %722 = vmatpush1.msra.mxu0 0.0
    %723 = vmatprep.subr.mxu0 0.0
    %724 = vmatpush1.msra.mxu0 0.0
    %725 = vmatprep.subr.mxu0 0.0
    %726 = vmatpush1.msra.mxu0 0.0
    %727 = vmatprep.subr.mxu0 0.0
    %728 = vmatpush1.msra.mxu0 0.0
    %729 = vmatprep.subr.mxu0 0.0
    %730 = vmatpush1.msra.mxu0 0.0
    %731 = vmatprep.subr.mxu0 0.0
    %732 = vmatpush1.msra.mxu0 0.0
    %733 = vmatprep.subr.mxu0 0.0
    %734 = vmatpush1.msra.mxu0 0.0
    %735 = vmatprep.subr.mxu0 0.0
    %736 = vmatpush1.msra.mxu0 0.0
    %737 = vmatprep.subr.mxu0 0.0
    %738 = vmatpush1.msra.mxu0 0.0
    %739 = vmatprep.subr.mxu0 0.0
    %740 = vmatpush1.msra.mxu0 0.0
    %741 = vmatprep.subr.mxu0 0.0
    %742 = vmatpush1.msra.mxu0 0.0
    %743 = vmatprep.subr.mxu0 0.0
    %744 = vmatpush1.msra.mxu0 0.0
    %745 = vmatprep.subr.mxu0 0.0
    %746 = vmatpush1.msra.mxu0 0.0
    %747 = vmatprep.subr.mxu0 0.0
    %748 = vmatpush1.msra.mxu0 0.0
    %749 = vmatprep.subr.mxu0 0.0
    %750 = vmatpush1.msra.mxu0 0.0
    %751 = vmatprep.subr.mxu0 0.0
    %752 = vmatpush1.msra.mxu0 0.0
    %753 = vmatprep.subr.mxu0 0.0
    %754 = vmatpush1.msra.mxu0 0.0
    %755 = vmatprep.subr.mxu0 0.0
    %756 = vmatpush1.msra.mxu0 0.0
    %757 = vmatprep.subr.mxu0 0.0
    %758 = vmatpush1.msra.mxu0 0.0
    %759 = vmatprep.subr.mxu0 0.0
    %760 = vmatpush1.msra.mxu0 0.0
    %761 = vmatprep.subr.mxu0 0.0
    %762 = vmatpush1.msra.mxu0 0.0
    %763 = vmatprep.subr.mxu0 0.0
    %764 = vmatpush1.msra.mxu0 0.0
    %765 = vmatprep.mubr.f32.mxu0 0.0
    %766 = vmatmul.mubr.f32.gmra.mrb[0].mxu0 %v693
    %v767 = vpop.f32.mrb[0].mxu0
    %v768 = vadd.f32 0.0, %v767
    %v769 = vpop.f32.mrb[0].mxu0
    %770 = vmatprep.mubr.f32.mxu0 0.0
    %771 = vmatmul.mubr.f32.gmra.mrb[0].mxu0 %v695
    %v772 = vpop.f32.mrb[0].mxu0
    %v773 = vadd.f32 0.0, %v772
    %v774 = vpop.f32.mrb[0].mxu0
    %775 = vmatprep.mubr.f32.mxu0 0.0
    %776 = vmatmul.mubr.f32.gmra.mrb[0].mxu0 %v697
    %v777 = vpop.f32.mrb[0].mxu0
    %v778 = vadd.f32 0.0, %v777
    %v779 = vpop.f32.mrb[0].mxu0
    %780 = vmatprep.mubr.f32.mxu0 0.0
    %781 = vmatmul.mubr.f32.gmra.mrb[0].mxu0 %v699
    %v782 = vpop.f32.mrb[0].mxu0
    %v783 = vadd.f32 0.0, %v782
    %v784 = vpop.f32.mrb[0].mxu0
    %785 = vdwg.mxu0
    %v786 = vld [vmem:[%s2] sm:$0xff]
    %v787 = vld [vmem:[%s2 + $0x8] sm:$0xff]
    %v788 = vld [vmem:[%s2 + $0x10] sm:$0xff]
    %v789 = vld [vmem:[%s2 + $0x18] sm:$0xff]
    %v790 = vld [vmem:[%s2 + $0x20] sm:$0xff]
    %v791 = vld [vmem:[%s2 + $0x28] sm:$0xff]
    %v792 = vld [vmem:[%s2 + $0x30] sm:$0xff]
    %v793 = vld [vmem:[%s2 + $0x38] sm:$0xff]
    %vm794 = vcmask 261120
    %v795 = vsel %vm794, %v786, 0.0
    %796 = vadd.xlane.f32.xlu0 %v795
    %v797 = vpop.xlane.xlu0 %796
    %v798 = vsel %vm794, %v787, 0.0
    %799 = vadd.xlane.f32.xlu0 %v798
    %v800 = vpop.xlane.xlu0 %799
    %v801 = vsel %vm794, %v788, 0.0
    %802 = vadd.xlane.f32.xlu0 %v801
    %v803 = vpop.xlane.xlu0 %802
    %v804 = vsel %vm794, %v789, 0.0
    %805 = vadd.xlane.f32.xlu0 %v804
    %v806 = vpop.xlane.xlu0 %805
    %vm807 = vcmp.eq.f32.partialorder %v797, 0.0
    %vm808 = vcmp.eq.f32.partialorder %v800, 0.0
    %vm809 = vcmp.eq.f32.partialorder %v803, 0.0
    %vm810 = vcmp.eq.f32.partialorder %v806, 0.0
    %v811 = vsel %vm807, 1.0, %v797
    %v812 = vsel %vm808, 1.0, %v800
    %v813 = vsel %vm809, 1.0, %v803
    %v814 = vsel %vm810, 1.0, %v806
    %v816 = vsel %vm794, %v786, 0
    %v819 = vsel %vm794, %v787, 0
    %v822 = vsel %vm794, %v788, 0
    %v825 = vsel %vm794, %v789, 0
    %827 = vmatprep.subr.mxu0 0.0
    %828 = vmatpush1.msra.mxu0 %v36
    %829 = vmatprep.subr.mxu0 0.0
    %830 = vmatpush1.msra.mxu0 %v37
    %831 = vmatprep.subr.mxu0 0.0
    %832 = vmatpush1.msra.mxu0 %v38
    %833 = vmatprep.subr.mxu0 0.0
    %834 = vmatpush1.msra.mxu0 %v39
    %835 = vmatprep.subr.mxu0 0.0
    %836 = vmatpush1.msra.mxu0 0.0
    %837 = vmatprep.subr.mxu0 0.0
    %838 = vmatpush1.msra.mxu0 0.0
    %839 = vmatprep.subr.mxu0 0.0
    %840 = vmatpush1.msra.mxu0 0.0
    %841 = vmatprep.subr.mxu0 0.0
    %842 = vmatpush1.msra.mxu0 0.0
    %843 = vmatprep.subr.mxu0 0.0
    %844 = vmatpush1.msra.mxu0 0.0
    %845 = vmatprep.subr.mxu0 0.0
    %846 = vmatpush1.msra.mxu0 0.0
    %847 = vmatprep.subr.mxu0 0.0
    %848 = vmatpush1.msra.mxu0 0.0
    %849 = vmatprep.subr.mxu0 0.0
    %850 = vmatpush1.msra.mxu0 0.0
    %851 = vmatprep.subr.mxu0 0.0
    %852 = vmatpush1.msra.mxu0 0.0
    %853 = vmatprep.subr.mxu0 0.0
    %854 = vmatpush1.msra.mxu0 0.0
    %855 = vmatprep.subr.mxu0 0.0
    %856 = vmatpush1.msra.mxu0 0.0
    %857 = vmatprep.subr.mxu0 0.0
    %858 = vmatpush1.msra.mxu0 0.0
    %859 = vmatprep.subr.mxu0 0.0
    %860 = vmatpush1.msra.mxu0 0.0
    %861 = vmatprep.subr.mxu0 0.0
    %862 = vmatpush1.msra.mxu0 0.0
    %863 = vmatprep.subr.mxu0 0.0
    %864 = vmatpush1.msra.mxu0 0.0
    %865 = vmatprep.subr.mxu0 0.0
    %866 = vmatpush1.msra.mxu0 0.0
    %867 = vmatprep.subr.mxu0 0.0
    %868 = vmatpush1.msra.mxu0 0.0
    %869 = vmatprep.subr.mxu0 0.0
    %870 = vmatpush1.msra.mxu0 0.0
    %871 = vmatprep.subr.mxu0 0.0
    %872 = vmatpush1.msra.mxu0 0.0
    %873 = vmatprep.subr.mxu0 0.0
    %874 = vmatpush1.msra.mxu0 0.0
    %875 = vmatprep.subr.mxu0 0.0
    %876 = vmatpush1.msra.mxu0 0.0
    %877 = vmatprep.subr.mxu0 0.0
    %878 = vmatpush1.msra.mxu0 0.0
    %879 = vmatprep.subr.mxu0 0.0
    %880 = vmatpush1.msra.mxu0 0.0
    %881 = vmatprep.subr.mxu0 0.0
    %882 = vmatpush1.msra.mxu0 0.0
    %883 = vmatprep.subr.mxu0 0.0
    %884 = vmatpush1.msra.mxu0 0.0
    %885 = vmatprep.subr.mxu0 0.0
    %886 = vmatpush1.msra.mxu0 0.0
    %887 = vmatprep.subr.mxu0 0.0
    %888 = vmatpush1.msra.mxu0 0.0
    %889 = vmatprep.subr.mxu0 0.0
    %890 = vmatpush1.msra.mxu0 0.0
    %891 = vmatprep.mubr.f32.mxu0 0.0
    %892 = vmatmul.mubr.f32.gmra.mrb[0].mxu0 %v816
    %v893 = vpop.f32.mrb[0].mxu0
    %v894 = vadd.f32 0.0, %v893
    %v895 = vpop.f32.mrb[0].mxu0
    %896 = vmatprep.mubr.f32.mxu0 0.0
    %897 = vmatmul.mubr.f32.gmra.mrb[0].mxu0 %v819
    %v898 = vpop.f32.mrb[0].mxu0
    %v899 = vadd.f32 0.0, %v898
    %v900 = vpop.f32.mrb[0].mxu0
    %901 = vmatprep.mubr.f32.mxu0 0.0
    %902 = vmatmul.mubr.f32.gmra.mrb[0].mxu0 %v822
    %v903 = vpop.f32.mrb[0].mxu0
    %v904 = vadd.f32 0.0, %v903
    %v905 = vpop.f32.mrb[0].mxu0
    %906 = vmatprep.mubr.f32.mxu0 0.0
    %907 = vmatmul.mubr.f32.gmra.mrb[0].mxu0 %v825
    %v908 = vpop.f32.mrb[0].mxu0
    %v909 = vadd.f32 0.0, %v908
    %v910 = vpop.f32.mrb[0].mxu0
    %911 = vdwg.mxu0
    %v912 = vld [vmem:[%s4] sm:$0xff]
    %v913 = vld [vmem:[%s4 + $0x8] sm:$0xff]
    %v914 = vld [vmem:[%s4 + $0x10] sm:$0xff]
    %v915 = vld [vmem:[%s4 + $0x18] sm:$0xff]
    %v916 = vld [vmem:[%s4 + $0x20] sm:$0xff]
    %v917 = vld [vmem:[%s4 + $0x28] sm:$0xff]
    %v918 = vld [vmem:[%s4 + $0x30] sm:$0xff]
    %v919 = vld [vmem:[%s4 + $0x38] sm:$0xff]
    %v921 = vsel %vm168, %v894, 0
    %v924 = vsel %vm168, %v899, 0
    %v927 = vsel %vm168, %v904, 0
    %v930 = vsel %vm168, %v909, 0
    %932 = vmatprep.subr.mxu0 0.0
    %933 = vmatpush1.msra.mxu0 %v912
    %934 = vmatprep.subr.mxu0 0.0
    %935 = vmatpush1.msra.mxu0 %v913
    %936 = vmatprep.subr.mxu0 0.0
    %937 = vmatpush1.msra.mxu0 %v914
    %938 = vmatprep.subr.mxu0 0.0
    %939 = vmatpush1.msra.mxu0 %v915
    %940 = vmatprep.subr.mxu0 0.0
    %941 = vmatpush1.msra.mxu0 %v916
    %942 = vmatprep.subr.mxu0 0.0
    %943 = vmatpush1.msra.mxu0 %v917
    %944 = vmatprep.subr.mxu0 0.0
    %945 = vmatpush1.msra.mxu0 %v918
    %946 = vmatprep.subr.mxu0 0.0
    %947 = vmatpush1.msra.mxu0 %v919
    %948 = vmatprep.subr.mxu0 0.0
    %949 = vmatpush1.msra.mxu0 0.0
    %950 = vmatprep.subr.mxu0 0.0
    %951 = vmatpush1.msra.mxu0 0.0
    %952 = vmatprep.subr.mxu0 0.0
    %953 = vmatpush1.msra.mxu0 0.0
    %954 = vmatprep.subr.mxu0 0.0
    %955 = vmatpush1.msra.mxu0 0.0
    %956 = vmatprep.subr.mxu0 0.0
    %957 = vmatpush1.msra.mxu0 0.0
    %958 = vmatprep.subr.mxu0 0.0
    %959 = vmatpush1.msra.mxu0 0.0
    %960 = vmatprep.subr.mxu0 0.0
    %961 = vmatpush1.msra.mxu0 0.0
    %962 = vmatprep.subr.mxu0 0.0
    %963 = vmatpush1.msra.mxu0 0.0
    %964 = vmatprep.subr.mxu0 0.0
    %965 = vmatpush1.msra.mxu0 0.0
    %966 = vmatprep.subr.mxu0 0.0
    %967 = vmatpush1.msra.mxu0 0.0
    %968 = vmatprep.subr.mxu0 0.0
    %969 = vmatpush1.msra.mxu0 0.0
    %970 = vmatprep.subr.mxu0 0.0
    %971 = vmatpush1.msra.mxu0 0.0
    %972 = vmatprep.subr.mxu0 0.0
    %973 = vmatpush1.msra.mxu0 0.0
    %974 = vmatprep.subr.mxu0 0.0
    %975 = vmatpush1.msra.mxu0 0.0
    %976 = vmatprep.subr.mxu0 0.0
    %977 = vmatpush1.msra.mxu0 0.0
    %978 = vmatprep.subr.mxu0 0.0
    %979 = vmatpush1.msra.mxu0 0.0
    %980 = vmatprep.subr.mxu0 0.0
    %981 = vmatpush1.msra.mxu0 0.0
    %982 = vmatprep.subr.mxu0 0.0
    %983 = vmatpush1.msra.mxu0 0.0
    %984 = vmatprep.subr.mxu0 0.0
    %985 = vmatpush1.msra.mxu0 0.0
    %986 = vmatprep.subr.mxu0 0.0
    %987 = vmatpush1.msra.mxu0 0.0
    %988 = vmatprep.subr.mxu0 0.0
    %989 = vmatpush1.msra.mxu0 0.0
    %990 = vmatprep.subr.mxu0 0.0
    %991 = vmatpush1.msra.mxu0 0.0
    %992 = vmatprep.subr.mxu0 0.0
    %993 = vmatpush1.msra.mxu0 0.0
    %994 = vmatprep.subr.mxu0 0.0
    %995 = vmatpush1.msra.mxu0 0.0
    %996 = vmatprep.mubr.f32.mxu0 0.0
    %997 = vmatmul.mubr.f32.gmra.mrb[0].mxu0 %v921
    %v998 = vpop.f32.mrb[0].mxu0
    %v999 = vadd.f32 0.0, %v998
    %v1000 = vpop.f32.mrb[0].mxu0
    %1001 = vmatprep.mubr.f32.mxu0 0.0
    %1002 = vmatmul.mubr.f32.gmra.mrb[0].mxu0 %v924
    %v1003 = vpop.f32.mrb[0].mxu0
    %v1004 = vadd.f32 0.0, %v1003
    %v1005 = vpop.f32.mrb[0].mxu0
    %1006 = vmatprep.mubr.f32.mxu0 0.0
    %1007 = vmatmul.mubr.f32.gmra.mrb[0].mxu0 %v927
    %v1008 = vpop.f32.mrb[0].mxu0
    %v1009 = vadd.f32 0.0, %v1008
    %v1010 = vpop.f32.mrb[0].mxu0
    %1011 = vmatprep.mubr.f32.mxu0 0.0
    %1012 = vmatmul.mubr.f32.gmra.mrb[0].mxu0 %v930
    %v1013 = vpop.f32.mrb[0].mxu0
    %v1014 = vadd.f32 0.0, %v1013
    %v1015 = vpop.f32.mrb[0].mxu0
    %1016 = vdwg.mxu0
    %v1017 = vadd.f32 %v768, %v999
    %v1018 = vadd.f32 %v773, %v1004
    %v1019 = vadd.f32 %v778, %v1009
    %v1020 = vadd.f32 %v783, %v1014
    %v1021 = vrcp.pop %v811
    %v1022 = vmul.f32 %v1017, %v1021
    %v1023 = vrcp.pop %v812
    %v1024 = vmul.f32 %v1018, %v1023
    %v1025 = vrcp.pop %v813
    %v1026 = vmul.f32 %v1019, %v1025
    %v1027 = vrcp.pop %v814
    %v1028 = vmul.f32 %v1020, %v1027
    %v1029 = vmax.f32 %v1022, 0.0
    %v1030 = vmax.f32 %v1024, 0.0
    %v1031 = vmax.f32 %v1026, 0.0
    %v1032 = vmax.f32 %v1028, 0.0
    %1033 = vmatprep.subr.mxu0 0.0
    %1034 = vmatpush1.msra.mxu0 %v1029
    %1035 = vmatprep.subr.mxu0 0.0
    %1036 = vmatpush1.msra.mxu0 %v1030
    %1037 = vmatprep.subr.mxu0 0.0
    %1038 = vmatpush1.msra.mxu0 %v1031
    %1039 = vmatprep.subr.mxu0 0.0
    %1040 = vmatpush1.msra.mxu0 %v1032
    %1041 = vmatprep.subr.mxu0 0.0
    %1042 = vmatpush1.msra.mxu0 0.0
    %1043 = vmatprep.subr.mxu0 0.0
    %1044 = vmatpush1.msra.mxu0 0.0
    %1045 = vmatprep.subr.mxu0 0.0
    %1046 = vmatpush1.msra.mxu0 0.0
    %1047 = vmatprep.subr.mxu0 0.0
    %1048 = vmatpush1.msra.mxu0 0.0
    %1049 = vmatprep.subr.mxu0 0.0
    %1050 = vmatpush1.msra.mxu0 0.0
    %1051 = vmatprep.subr.mxu0 0.0
    %1052 = vmatpush1.msra.mxu0 0.0
    %1053 = vmatprep.subr.mxu0 0.0
    %1054 = vmatpush1.msra.mxu0 0.0
    %1055 = vmatprep.subr.mxu0 0.0
    %1056 = vmatpush1.msra.mxu0 0.0
    %1057 = vmatprep.subr.mxu0 0.0
    %1058 = vmatpush1.msra.mxu0 0.0
    %1059 = vmatprep.subr.mxu0 0.0
    %1060 = vmatpush1.msra.mxu0 0.0
    %1061 = vmatprep.subr.mxu0 0.0
    %1062 = vmatpush1.msra.mxu0 0.0
    %1063 = vmatprep.subr.mxu0 0.0
    %1064 = vmatpush1.msra.mxu0 0.0
    %1065 = vmatprep.subr.mxu0 0.0
    %1066 = vmatpush1.msra.mxu0 0.0
    %1067 = vmatprep.subr.mxu0 0.0
    %1068 = vmatpush1.msra.mxu0 0.0
    %1069 = vmatprep.subr.mxu0 0.0
    %1070 = vmatpush1.msra.mxu0 0.0
    %1071 = vmatprep.subr.mxu0 0.0
    %1072 = vmatpush1.msra.mxu0 0.0
    %1073 = vmatprep.subr.mxu0 0.0
    %1074 = vmatpush1.msra.mxu0 0.0
    %1075 = vmatprep.subr.mxu0 0.0
    %1076 = vmatpush1.msra.mxu0 0.0
    %1077 = vmatprep.subr.mxu0 0.0
    %1078 = vmatpush1.msra.mxu0 0.0
    %1079 = vmatprep.subr.mxu0 0.0
    %1080 = vmatpush1.msra.mxu0 0.0
    %1081 = vmatprep.subr.mxu0 0.0
    %1082 = vmatpush1.msra.mxu0 0.0
    %1083 = vmatprep.subr.mxu0 0.0
    %1084 = vmatpush1.msra.mxu0 0.0
    %1085 = vmatprep.subr.mxu0 0.0
    %1086 = vmatpush1.msra.mxu0 0.0
    %1087 = vmatprep.subr.mxu0 0.0
    %1088 = vmatpush1.msra.mxu0 0.0
    %1089 = vmatprep.subr.mxu0 0.0
    %1090 = vmatpush1.msra.mxu0 0.0
    %1091 = vmatprep.subr.mxu0 0.0
    %1092 = vmatpush1.msra.mxu0 0.0
    %1093 = vmatprep.subr.mxu0 0.0
    %1094 = vmatpush1.msra.mxu0 0.0
    %1095 = vmatprep.subr.mxu0 0.0
    %1096 = vmatpush1.msra.mxu0 0.0
    %1097 = vmatprep.mubr.f32.mxu0 0.0
    %1098 = vmatmul.mubr.f32.gmra.mrb[0].mxu0 %v816
    %v1099 = vpop.f32.mrb[0].mxu0
    %v1100 = vadd.f32 0.0, %v1099
    %v1101 = vpop.f32.mrb[0].mxu0
    %1102 = vmatprep.mubr.f32.mxu0 0.0
    %1103 = vmatmul.mubr.f32.gmra.mrb[0].mxu0 %v819
    %v1104 = vpop.f32.mrb[0].mxu0
    %v1105 = vadd.f32 0.0, %v1104
    %v1106 = vpop.f32.mrb[0].mxu0
    %1107 = vmatprep.mubr.f32.mxu0 0.0
    %1108 = vmatmul.mubr.f32.gmra.mrb[0].mxu0 %v822
    %v1109 = vpop.f32.mrb[0].mxu0
    %v1110 = vadd.f32 0.0, %v1109
    %v1111 = vpop.f32.mrb[0].mxu0
    %1112 = vmatprep.mubr.f32.mxu0 0.0
    %1113 = vmatmul.mubr.f32.gmra.mrb[0].mxu0 %v825
    %v1114 = vpop.f32.mrb[0].mxu0
    %v1115 = vadd.f32 0.0, %v1114
    %v1116 = vpop.f32.mrb[0].mxu0
    %1117 = vdwg.mxu0
    %1122 = vrot.lane.b32.xlu0 %v1100, 64
    %v1123 = vpop.permute.xlu0 %1122
    %1124 = vrot.lane.b32.xlu0 %v1105, 64
    %v1125 = vpop.permute.xlu0 %1124
    %1126 = vrot.lane.b32.xlu0 %v1110, 64
    %v1127 = vpop.permute.xlu0 %1126
    %1128 = vrot.lane.b32.xlu0 %v1115, 64
    %v1129 = vpop.permute.xlu0 %1128
    %v1134 = vsel %vm168, %v894, %v1123
    %v1135 = vsel %vm168, %v899, %v1125
    %v1136 = vsel %vm168, %v904, %v1127
    %v1137 = vsel %vm168, %v909, %v1129
    %v1138 = vld [vmem:[%s5] sm:$0xff]
    %v1139 = vld [vmem:[%s5 + $0x8] sm:$0xff]
    %v1140 = vld [vmem:[%s5 + $0x10] sm:$0xff]
    %v1141 = vld [vmem:[%s5 + $0x18] sm:$0xff]
    %v1142 = vld [vmem:[%s5 + $0x20] sm:$0xff]
    %v1143 = vld [vmem:[%s5 + $0x28] sm:$0xff]
    %v1144 = vld [vmem:[%s5 + $0x30] sm:$0xff]
    %v1145 = vld [vmem:[%s5 + $0x38] sm:$0xff]
    %v1146 = vld [vmem:[%s5 + $0x40] sm:$0xff]
    %v1147 = vld [vmem:[%s5 + $0x48] sm:$0xff]
    %v1148 = vld [vmem:[%s5 + $0x50] sm:$0xff]
    %v1149 = vld [vmem:[%s5 + $0x58] sm:$0xff]
    %vm1150 = vcmask 785408
    %v1152 = vsel %vm1150, %v1134, 0
    %v1155 = vsel %vm1150, %v1135, 0
    %v1158 = vsel %vm1150, %v1136, 0
    %v1161 = vsel %vm1150, %v1137, 0
    %1163 = vmatprep.subr.mxu0 0.0
    %1164 = vmatpush1.msra.mxu0 %v1138
    %1165 = vmatprep.subr.mxu0 0.0
    %1166 = vmatpush1.msra.mxu0 %v1139
    %1167 = vmatprep.subr.mxu0 0.0
    %1168 = vmatpush1.msra.mxu0 %v1140
    %1169 = vmatprep.subr.mxu0 0.0
    %1170 = vmatpush1.msra.mxu0 %v1141
    %1171 = vmatprep.subr.mxu0 0.0
    %1172 = vmatpush1.msra.mxu0 %v1142
    %1173 = vmatprep.subr.mxu0 0.0
    %1174 = vmatpush1.msra.mxu0 %v1143
    %1175 = vmatprep.subr.mxu0 0.0
    %1176 = vmatpush1.msra.mxu0 %v1144
    %1177 = vmatprep.subr.mxu0 0.0
    %1178 = vmatpush1.msra.mxu0 %v1145
    %1179 = vmatprep.subr.mxu0 0.0
    %1180 = vmatpush1.msra.mxu0 %v1146
    %1181 = vmatprep.subr.mxu0 0.0
    %1182 = vmatpush1.msra.mxu0 %v1147
    %1183 = vmatprep.subr.mxu0 0.0
    %1184 = vmatpush1.msra.mxu0 %v1148
    %1185 = vmatprep.subr.mxu0 0.0
    %1186 = vmatpush1.msra.mxu0 %v1149
    %1187 = vmatprep.subr.mxu0 0.0
    %1188 = vmatpush1.msra.mxu0 0.0
    %1189 = vmatprep.subr.mxu0 0.0
    %1190 = vmatpush1.msra.mxu0 0.0
    %1191 = vmatprep.subr.mxu0 0.0
    %1192 = vmatpush1.msra.mxu0 0.0
    %1193 = vmatprep.subr.mxu0 0.0
    %1194 = vmatpush1.msra.mxu0 0.0
    %1195 = vmatprep.subr.mxu0 0.0
    %1196 = vmatpush1.msra.mxu0 0.0
    %1197 = vmatprep.subr.mxu0 0.0
    %1198 = vmatpush1.msra.mxu0 0.0
    %1199 = vmatprep.subr.mxu0 0.0
    %1200 = vmatpush1.msra.mxu0 0.0
    %1201 = vmatprep.subr.mxu0 0.0
    %1202 = vmatpush1.msra.mxu0 0.0
    %1203 = vmatprep.subr.mxu0 0.0
    %1204 = vmatpush1.msra.mxu0 0.0
    %1205 = vmatprep.subr.mxu0 0.0
    %1206 = vmatpush1.msra.mxu0 0.0
    %1207 = vmatprep.subr.mxu0 0.0
    %1208 = vmatpush1.msra.mxu0 0.0
    %1209 = vmatprep.subr.mxu0 0.0
    %1210 = vmatpush1.msra.mxu0 0.0
    %1211 = vmatprep.subr.mxu0 0.0
    %1212 = vmatpush1.msra.mxu0 0.0
    %1213 = vmatprep.subr.mxu0 0.0
    %1214 = vmatpush1.msra.mxu0 0.0
    %1215 = vmatprep.subr.mxu0 0.0
    %1216 = vmatpush1.msra.mxu0 0.0
    %1217 = vmatprep.subr.mxu0 0.0
    %1218 = vmatpush1.msra.mxu0 0.0
    %1219 = vmatprep.subr.mxu0 0.0
    %1220 = vmatpush1.msra.mxu0 0.0
    %1221 = vmatprep.subr.mxu0 0.0
    %1222 = vmatpush1.msra.mxu0 0.0
    %1223 = vmatprep.subr.mxu0 0.0
    %1224 = vmatpush1.msra.mxu0 0.0
    %1225 = vmatprep.subr.mxu0 0.0
    %1226 = vmatpush1.msra.mxu0 0.0
    %1227 = vmatprep.mubr.f32.mxu0 0.0
    %1228 = vmatmul.mubr.f32.gmra.mrb[0].mxu0 %v1152
    %v1229 = vpop.f32.mrb[0].mxu0
    %v1230 = vadd.f32 0.0, %v1229
    %v1231 = vpop.f32.mrb[0].mxu0
    %1232 = vmatprep.mubr.f32.mxu0 0.0
    %1233 = vmatmul.mubr.f32.gmra.mrb[0].mxu0 %v1155
    %v1234 = vpop.f32.mrb[0].mxu0
    %v1235 = vadd.f32 0.0, %v1234
    %v1236 = vpop.f32.mrb[0].mxu0
    %1237 = vmatprep.mubr.f32.mxu0 0.0
    %1238 = vmatmul.mubr.f32.gmra.mrb[0].mxu0 %v1158
    %v1239 = vpop.f32.mrb[0].mxu0
    %v1240 = vadd.f32 0.0, %v1239
    %v1241 = vpop.f32.mrb[0].mxu0
    %1242 = vmatprep.mubr.f32.mxu0 0.0
    %1243 = vmatmul.mubr.f32.gmra.mrb[0].mxu0 %v1161
    %v1244 = vpop.f32.mrb[0].mxu0
    %v1245 = vadd.f32 0.0, %v1244
    %v1246 = vpop.f32.mrb[0].mxu0
    %1247 = vdwg.mxu0
    %1252 = vrot.lane.b32.xlu0 %v1230, 32
    %v1253 = vpop.permute.xlu0 %1252
    %1254 = vrot.lane.b32.xlu0 %v1235, 32
    %v1255 = vpop.permute.xlu0 %1254
    %1256 = vrot.lane.b32.xlu0 %v1240, 32
    %v1257 = vpop.permute.xlu0 %1256
    %1258 = vrot.lane.b32.xlu0 %v1245, 32
    %v1259 = vpop.permute.xlu0 %1258
    %v1264 = vadd.f32 %v768, %v1253
    %v1265 = vadd.f32 %v773, %v1255
    %v1266 = vadd.f32 %v778, %v1257
    %v1267 = vadd.f32 %v783, %v1259
    %v1268 = vmul.f32 %v1264, %v1021
    %v1269 = vmul.f32 %v1265, %v1023
    %v1270 = vmul.f32 %v1266, %v1025
    %v1271 = vmul.f32 %v1267, %v1027
    %v1272 = vmax.f32 %v1268, 0.0
    %v1273 = vmax.f32 %v1269, 0.0
    %v1274 = vmax.f32 %v1270, 0.0
    %v1275 = vmax.f32 %v1271, 0.0
    %v1276 = vsel %vm794, %v1029, %v1272
    %v1277 = vsel %vm794, %v1030, %v1273
    %v1278 = vsel %vm794, %v1031, %v1274
    %v1279 = vsel %vm794, %v1032, %v1275
    %v1280 = vadd.f32 %v1276, %v36
    %v1281 = vadd.f32 %v1277, %v37
    %v1282 = vadd.f32 %v1278, %v38
    %v1283 = vadd.f32 %v1279, %v39
    %v1284 = vsel %vm794, %v790, 0.0
    %1285 = vadd.xlane.f32.xlu0 %v1284
    %v1286 = vpop.xlane.xlu0 %1285
    %v1287 = vsel %vm794, %v791, 0.0
    %1288 = vadd.xlane.f32.xlu0 %v1287
    %v1289 = vpop.xlane.xlu0 %1288
    %v1290 = vsel %vm794, %v792, 0.0
    %1291 = vadd.xlane.f32.xlu0 %v1290
    %v1292 = vpop.xlane.xlu0 %1291
    %v1293 = vsel %vm794, %v793, 0.0
    %1294 = vadd.xlane.f32.xlu0 %v1293
    %v1295 = vpop.xlane.xlu0 %1294
    %vm1296 = vcmp.eq.f32.partialorder %v1286, 0.0
    %vm1297 = vcmp.eq.f32.partialorder %v1289, 0.0
    %vm1298 = vcmp.eq.f32.partialorder %v1292, 0.0
    %vm1299 = vcmp.eq.f32.partialorder %v1295, 0.0
    %v1300 = vsel %vm1296, 1.0, %v1286
    %v1301 = vsel %vm1297, 1.0, %v1289
    %v1302 = vsel %vm1298, 1.0, %v1292
    %v1303 = vsel %vm1299, 1.0, %v1295
    %v1305 = vsel %vm794, %v790, 0
    %v1308 = vsel %vm794, %v791, 0
    %v1311 = vsel %vm794, %v792, 0
    %v1314 = vsel %vm794, %v793, 0
    %1316 = vmatprep.subr.mxu0 0.0
    %1317 = vmatpush1.msra.mxu0 %v36
    %1318 = vmatprep.subr.mxu0 0.0
    %1319 = vmatpush1.msra.mxu0 %v37
    %1320 = vmatprep.subr.mxu0 0.0
    %1321 = vmatpush1.msra.mxu0 %v38
    %1322 = vmatprep.subr.mxu0 0.0
    %1323 = vmatpush1.msra.mxu0 %v39
    %1324 = vmatprep.subr.mxu0 0.0
    %1325 = vmatpush1.msra.mxu0 0.0
    %1326 = vmatprep.subr.mxu0 0.0
    %1327 = vmatpush1.msra.mxu0 0.0
    %1328 = vmatprep.subr.mxu0 0.0
    %1329 = vmatpush1.msra.mxu0 0.0
    %1330 = vmatprep.subr.mxu0 0.0
    %1331 = vmatpush1.msra.mxu0 0.0
    %1332 = vmatprep.subr.mxu0 0.0
    %1333 = vmatpush1.msra.mxu0 0.0
    %1334 = vmatprep.subr.mxu0 0.0
    %1335 = vmatpush1.msra.mxu0 0.0
    %1336 = vmatprep.subr.mxu0 0.0
    %1337 = vmatpush1.msra.mxu0 0.0
    %1338 = vmatprep.subr.mxu0 0.0
    %1339 = vmatpush1.msra.mxu0 0.0
    %1340 = vmatprep.subr.mxu0 0.0
    %1341 = vmatpush1.msra.mxu0 0.0
    %1342 = vmatprep.subr.mxu0 0.0
    %1343 = vmatpush1.msra.mxu0 0.0
    %1344 = vmatprep.subr.mxu0 0.0
    %1345 = vmatpush1.msra.mxu0 0.0
    %1346 = vmatprep.subr.mxu0 0.0
    %1347 = vmatpush1.msra.mxu0 0.0
    %1348 = vmatprep.subr.mxu0 0.0
    %1349 = vmatpush1.msra.mxu0 0.0
    %1350 = vmatprep.subr.mxu0 0.0
    %1351 = vmatpush1.msra.mxu0 0.0
    %1352 = vmatprep.subr.mxu0 0.0
    %1353 = vmatpush1.msra.mxu0 0.0
    %1354 = vmatprep.subr.mxu0 0.0
    %1355 = vmatpush1.msra.mxu0 0.0
    %1356 = vmatprep.subr.mxu0 0.0
    %1357 = vmatpush1.msra.mxu0 0.0
    %1358 = vmatprep.subr.mxu0 0.0
    %1359 = vmatpush1.msra.mxu0 0.0
    %1360 = vmatprep.subr.mxu0 0.0
    %1361 = vmatpush1.msra.mxu0 0.0
    %1362 = vmatprep.subr.mxu0 0.0
    %1363 = vmatpush1.msra.mxu0 0.0
    %1364 = vmatprep.subr.mxu0 0.0
    %1365 = vmatpush1.msra.mxu0 0.0
    %1366 = vmatprep.subr.mxu0 0.0
    %1367 = vmatpush1.msra.mxu0 0.0
    %1368 = vmatprep.subr.mxu0 0.0
    %1369 = vmatpush1.msra.mxu0 0.0
    %1370 = vmatprep.subr.mxu0 0.0
    %1371 = vmatpush1.msra.mxu0 0.0
    %1372 = vmatprep.subr.mxu0 0.0
    %1373 = vmatpush1.msra.mxu0 0.0
    %1374 = vmatprep.subr.mxu0 0.0
    %1375 = vmatpush1.msra.mxu0 0.0
    %1376 = vmatprep.subr.mxu0 0.0
    %1377 = vmatpush1.msra.mxu0 0.0
    %1378 = vmatprep.subr.mxu0 0.0
    %1379 = vmatpush1.msra.mxu0 0.0
    %1380 = vmatprep.mubr.f32.mxu0 0.0
    %1381 = vmatmul.mubr.f32.gmra.mrb[0].mxu0 %v1305
    %v1382 = vpop.f32.mrb[0].mxu0
    %v1383 = vadd.f32 0.0, %v1382
    %v1384 = vpop.f32.mrb[0].mxu0
    %1385 = vmatprep.mubr.f32.mxu0 0.0
    %1386 = vmatmul.mubr.f32.gmra.mrb[0].mxu0 %v1308
    %v1387 = vpop.f32.mrb[0].mxu0
    %v1388 = vadd.f32 0.0, %v1387
    %v1389 = vpop.f32.mrb[0].mxu0
    %1390 = vmatprep.mubr.f32.mxu0 0.0
    %1391 = vmatmul.mubr.f32.gmra.mrb[0].mxu0 %v1311
    %v1392 = vpop.f32.mrb[0].mxu0
    %v1393 = vadd.f32 0.0, %v1392
    %v1394 = vpop.f32.mrb[0].mxu0
    %1395 = vmatprep.mubr.f32.mxu0 0.0
    %1396 = vmatmul.mubr.f32.gmra.mrb[0].mxu0 %v1314
    %v1397 = vpop.f32.mrb[0].mxu0
    %v1398 = vadd.f32 0.0, %v1397
    %v1399 = vpop.f32.mrb[0].mxu0
    %1400 = vdwg.mxu0
    %v1401 = vld [vmem:[%s6] sm:$0xff]
    %v1402 = vld [vmem:[%s6 + $0x8] sm:$0xff]
    %v1403 = vld [vmem:[%s6 + $0x10] sm:$0xff]
    %v1404 = vld [vmem:[%s6 + $0x18] sm:$0xff]
    %v1405 = vld [vmem:[%s6 + $0x20] sm:$0xff]
    %v1406 = vld [vmem:[%s6 + $0x28] sm:$0xff]
    %v1407 = vld [vmem:[%s6 + $0x30] sm:$0xff]
    %v1408 = vld [vmem:[%s6 + $0x38] sm:$0xff]
    %v1410 = vsel %vm168, %v1383, 0
    %v1413 = vsel %vm168, %v1388, 0
    %v1416 = vsel %vm168, %v1393, 0
    %v1419 = vsel %vm168, %v1398, 0
    %1421 = vmatprep.subr.mxu0 0.0
    %1422 = vmatpush1.msra.mxu0 %v1401
    %1423 = vmatprep.subr.mxu0 0.0
    %1424 = vmatpush1.msra.mxu0 %v1402
    %1425 = vmatprep.subr.mxu0 0.0
    %1426 = vmatpush1.msra.mxu0 %v1403
    %1427 = vmatprep.subr.mxu0 0.0
    %1428 = vmatpush1.msra.mxu0 %v1404
    %1429 = vmatprep.subr.mxu0 0.0
    %1430 = vmatpush1.msra.mxu0 %v1405
    %1431 = vmatprep.subr.mxu0 0.0
    %1432 = vmatpush1.msra.mxu0 %v1406
    %1433 = vmatprep.subr.mxu0 0.0
    %1434 = vmatpush1.msra.mxu0 %v1407
    %1435 = vmatprep.subr.mxu0 0.0
    %1436 = vmatpush1.msra.mxu0 %v1408
    %1437 = vmatprep.subr.mxu0 0.0
    %1438 = vmatpush1.msra.mxu0 0.0
    %1439 = vmatprep.subr.mxu0 0.0
    %1440 = vmatpush1.msra.mxu0 0.0
    %1441 = vmatprep.subr.mxu0 0.0
    %1442 = vmatpush1.msra.mxu0 0.0
    %1443 = vmatprep.subr.mxu0 0.0
    %1444 = vmatpush1.msra.mxu0 0.0
    %1445 = vmatprep.subr.mxu0 0.0
    %1446 = vmatpush1.msra.mxu0 0.0
    %1447 = vmatprep.subr.mxu0 0.0
    %1448 = vmatpush1.msra.mxu0 0.0
    %1449 = vmatprep.subr.mxu0 0.0
    %1450 = vmatpush1.msra.mxu0 0.0
    %1451 = vmatprep.subr.mxu0 0.0
    %1452 = vmatpush1.msra.mxu0 0.0
    %1453 = vmatprep.subr.mxu0 0.0
    %1454 = vmatpush1.msra.mxu0 0.0
    %1455 = vmatprep.subr.mxu0 0.0
    %1456 = vmatpush1.msra.mxu0 0.0
    %1457 = vmatprep.subr.mxu0 0.0
    %1458 = vmatpush1.msra.mxu0 0.0
    %1459 = vmatprep.subr.mxu0 0.0
    %1460 = vmatpush1.msra.mxu0 0.0
    %1461 = vmatprep.subr.mxu0 0.0
    %1462 = vmatpush1.msra.mxu0 0.0
    %1463 = vmatprep.subr.mxu0 0.0
    %1464 = vmatpush1.msra.mxu0 0.0
    %1465 = vmatprep.subr.mxu0 0.0
    %1466 = vmatpush1.msra.mxu0 0.0
    %1467 = vmatprep.subr.mxu0 0.0
    %1468 = vmatpush1.msra.mxu0 0.0
    %1469 = vmatprep.subr.mxu0 0.0
    %1470 = vmatpush1.msra.mxu0 0.0
    %1471 = vmatprep.subr.mxu0 0.0
    %1472 = vmatpush1.msra.mxu0 0.0
    %1473 = vmatprep.subr.mxu0 0.0
    %1474 = vmatpush1.msra.mxu0 0.0
    %1475 = vmatprep.subr.mxu0 0.0
    %1476 = vmatpush1.msra.mxu0 0.0
    %1477 = vmatprep.subr.mxu0 0.0
    %1478 = vmatpush1.msra.mxu0 0.0
    %1479 = vmatprep.subr.mxu0 0.0
    %1480 = vmatpush1.msra.mxu0 0.0
    %1481 = vmatprep.subr.mxu0 0.0
    %1482 = vmatpush1.msra.mxu0 0.0
    %1483 = vmatprep.subr.mxu0 0.0
    %1484 = vmatpush1.msra.mxu0 0.0
    %1485 = vmatprep.mubr.f32.mxu0 0.0
    %1486 = vmatmul.mubr.f32.gmra.mrb[0].mxu0 %v1410
    %v1487 = vpop.f32.mrb[0].mxu0
    %v1488 = vadd.f32 0.0, %v1487
    %v1489 = vpop.f32.mrb[0].mxu0
    %1490 = vmatprep.mubr.f32.mxu0 0.0
    %1491 = vmatmul.mubr.f32.gmra.mrb[0].mxu0 %v1413
    %v1492 = vpop.f32.mrb[0].mxu0
    %v1493 = vadd.f32 0.0, %v1492
    %v1494 = vpop.f32.mrb[0].mxu0
    %1495 = vmatprep.mubr.f32.mxu0 0.0
    %1496 = vmatmul.mubr.f32.gmra.mrb[0].mxu0 %v1416
    %v1497 = vpop.f32.mrb[0].mxu0
    %v1498 = vadd.f32 0.0, %v1497
    %v1499 = vpop.f32.mrb[0].mxu0
    %1500 = vmatprep.mubr.f32.mxu0 0.0
    %1501 = vmatmul.mubr.f32.gmra.mrb[0].mxu0 %v1419
    %v1502 = vpop.f32.mrb[0].mxu0
    %v1503 = vadd.f32 0.0, %v1502
    %v1504 = vpop.f32.mrb[0].mxu0
    %1505 = vdwg.mxu0
    %1510 = vrot.lane.b32.xlu0 %v1488, 64
    %v1511 = vpop.permute.xlu0 %1510
    %1512 = vrot.lane.b32.xlu0 %v1493, 64
    %v1513 = vpop.permute.xlu0 %1512
    %1514 = vrot.lane.b32.xlu0 %v1498, 64
    %v1515 = vpop.permute.xlu0 %1514
    %1516 = vrot.lane.b32.xlu0 %v1503, 64
    %v1517 = vpop.permute.xlu0 %1516
    %v1522 = vadd.f32 %v768, %v1511
    %v1523 = vadd.f32 %v773, %v1513
    %v1524 = vadd.f32 %v778, %v1515
    %v1525 = vadd.f32 %v783, %v1517
    %v1526 = vrcp.pop %v1300
    %v1527 = vmul.f32 %v1522, %v1526
    %v1528 = vrcp.pop %v1301
    %v1529 = vmul.f32 %v1523, %v1528
    %v1530 = vrcp.pop %v1302
    %v1531 = vmul.f32 %v1524, %v1530
    %v1532 = vrcp.pop %v1303
    %v1533 = vmul.f32 %v1525, %v1532
    %v1534 = vmax.f32 %v1527, 0.0
    %v1535 = vmax.f32 %v1529, 0.0
    %v1536 = vmax.f32 %v1531, 0.0
    %v1537 = vmax.f32 %v1533, 0.0
    %1542 = vrot.lane.b32.xlu0 %v1534, 64
    %v1543 = vpop.permute.xlu0 %1542
    %1544 = vrot.lane.b32.xlu0 %v1535, 64
    %v1545 = vpop.permute.xlu0 %1544
    %1546 = vrot.lane.b32.xlu0 %v1536, 64
    %v1547 = vpop.permute.xlu0 %1546
    %1548 = vrot.lane.b32.xlu0 %v1537, 64
    %v1549 = vpop.permute.xlu0 %1548
    %1554 = vmatprep.subr.mxu0 0.0
    %1555 = vmatpush1.msra.mxu0 %v1543
    %1556 = vmatprep.subr.mxu0 0.0
    %1557 = vmatpush1.msra.mxu0 %v1545
    %1558 = vmatprep.subr.mxu0 0.0
    %1559 = vmatpush1.msra.mxu0 %v1547
    %1560 = vmatprep.subr.mxu0 0.0
    %1561 = vmatpush1.msra.mxu0 %v1549
    %1562 = vmatprep.subr.mxu0 0.0
    %1563 = vmatpush1.msra.mxu0 0.0
    %1564 = vmatprep.subr.mxu0 0.0
    %1565 = vmatpush1.msra.mxu0 0.0
    %1566 = vmatprep.subr.mxu0 0.0
    %1567 = vmatpush1.msra.mxu0 0.0
    %1568 = vmatprep.subr.mxu0 0.0
    %1569 = vmatpush1.msra.mxu0 0.0
    %1570 = vmatprep.subr.mxu0 0.0
    %1571 = vmatpush1.msra.mxu0 0.0
    %1572 = vmatprep.subr.mxu0 0.0
    %1573 = vmatpush1.msra.mxu0 0.0
    %1574 = vmatprep.subr.mxu0 0.0
    %1575 = vmatpush1.msra.mxu0 0.0
    %1576 = vmatprep.subr.mxu0 0.0
    %1577 = vmatpush1.msra.mxu0 0.0
    %1578 = vmatprep.subr.mxu0 0.0
    %1579 = vmatpush1.msra.mxu0 0.0
    %1580 = vmatprep.subr.mxu0 0.0
    %1581 = vmatpush1.msra.mxu0 0.0
    %1582 = vmatprep.subr.mxu0 0.0
    %1583 = vmatpush1.msra.mxu0 0.0
    %1584 = vmatprep.subr.mxu0 0.0
    %1585 = vmatpush1.msra.mxu0 0.0
    %1586 = vmatprep.subr.mxu0 0.0
    %1587 = vmatpush1.msra.mxu0 0.0
    %1588 = vmatprep.subr.mxu0 0.0
    %1589 = vmatpush1.msra.mxu0 0.0
    %1590 = vmatprep.subr.mxu0 0.0
    %1591 = vmatpush1.msra.mxu0 0.0
    %1592 = vmatprep.subr.mxu0 0.0
    %1593 = vmatpush1.msra.mxu0 0.0
    %1594 = vmatprep.subr.mxu0 0.0
    %1595 = vmatpush1.msra.mxu0 0.0
    %1596 = vmatprep.subr.mxu0 0.0
    %1597 = vmatpush1.msra.mxu0 0.0
    %1598 = vmatprep.subr.mxu0 0.0
    %1599 = vmatpush1.msra.mxu0 0.0
    %1600 = vmatprep.subr.mxu0 0.0
    %1601 = vmatpush1.msra.mxu0 0.0
    %1602 = vmatprep.subr.mxu0 0.0
    %1603 = vmatpush1.msra.mxu0 0.0
    %1604 = vmatprep.subr.mxu0 0.0
    %1605 = vmatpush1.msra.mxu0 0.0
    %1606 = vmatprep.subr.mxu0 0.0
    %1607 = vmatpush1.msra.mxu0 0.0
    %1608 = vmatprep.subr.mxu0 0.0
    %1609 = vmatpush1.msra.mxu0 0.0
    %1610 = vmatprep.subr.mxu0 0.0
    %1611 = vmatpush1.msra.mxu0 0.0
    %1612 = vmatprep.subr.mxu0 0.0
    %1613 = vmatpush1.msra.mxu0 0.0
    %1614 = vmatprep.subr.mxu0 0.0
    %1615 = vmatpush1.msra.mxu0 0.0
    %1616 = vmatprep.subr.mxu0 0.0
    %1617 = vmatpush1.msra.mxu0 0.0
    %1618 = vmatprep.mubr.f32.mxu0 0.0
    %1619 = vmatmul.mubr.f32.gmra.mrb[0].mxu0 %v1305
    %v1620 = vpop.f32.mrb[0].mxu0
    %v1621 = vadd.f32 0.0, %v1620
    %v1622 = vpop.f32.mrb[0].mxu0
    %1623 = vmatprep.mubr.f32.mxu0 0.0
    %1624 = vmatmul.mubr.f32.gmra.mrb[0].mxu0 %v1308
    %v1625 = vpop.f32.mrb[0].mxu0
    %v1626 = vadd.f32 0.0, %v1625
    %v1627 = vpop.f32.mrb[0].mxu0
    %1628 = vmatprep.mubr.f32.mxu0 0.0
    %1629 = vmatmul.mubr.f32.gmra.mrb[0].mxu0 %v1311
    %v1630 = vpop.f32.mrb[0].mxu0
    %v1631 = vadd.f32 0.0, %v1630
    %v1632 = vpop.f32.mrb[0].mxu0
    %1633 = vmatprep.mubr.f32.mxu0 0.0
    %1634 = vmatmul.mubr.f32.gmra.mrb[0].mxu0 %v1314
    %v1635 = vpop.f32.mrb[0].mxu0
    %v1636 = vadd.f32 0.0, %v1635
    %v1637 = vpop.f32.mrb[0].mxu0
    %1638 = vdwg.mxu0
    %1643 = vrot.lane.b32.xlu0 %v1621, 64
    %v1644 = vpop.permute.xlu0 %1643
    %1645 = vrot.lane.b32.xlu0 %v1626, 64
    %v1646 = vpop.permute.xlu0 %1645
    %1647 = vrot.lane.b32.xlu0 %v1631, 64
    %v1648 = vpop.permute.xlu0 %1647
    %1649 = vrot.lane.b32.xlu0 %v1636, 64
    %v1650 = vpop.permute.xlu0 %1649
    %v1655 = vsel %vm168, %v1383, %v1644
    %v1656 = vsel %vm168, %v1388, %v1646
    %v1657 = vsel %vm168, %v1393, %v1648
    %v1658 = vsel %vm168, %v1398, %v1650
    %v1659 = vld [vmem:[%s7] sm:$0xff]
    %v1660 = vld [vmem:[%s7 + $0x8] sm:$0xff]
    %v1661 = vld [vmem:[%s7 + $0x10] sm:$0xff]
    %v1662 = vld [vmem:[%s7 + $0x18] sm:$0xff]
    %v1663 = vld [vmem:[%s7 + $0x20] sm:$0xff]
    %v1664 = vld [vmem:[%s7 + $0x28] sm:$0xff]
    %v1665 = vld [vmem:[%s7 + $0x30] sm:$0xff]
    %v1666 = vld [vmem:[%s7 + $0x38] sm:$0xff]
    %v1667 = vld [vmem:[%s7 + $0x40] sm:$0xff]
    %v1668 = vld [vmem:[%s7 + $0x48] sm:$0xff]
    %v1669 = vld [vmem:[%s7 + $0x50] sm:$0xff]
    %v1670 = vld [vmem:[%s7 + $0x58] sm:$0xff]
    %v1672 = vsel %vm1150, %v1655, 0
    %v1675 = vsel %vm1150, %v1656, 0
    %v1678 = vsel %vm1150, %v1657, 0
    %v1681 = vsel %vm1150, %v1658, 0
    %1683 = vmatprep.subr.mxu0 0.0
    %1684 = vmatpush1.msra.mxu0 %v1659
    %1685 = vmatprep.subr.mxu0 0.0
    %1686 = vmatpush1.msra.mxu0 %v1660
    %1687 = vmatprep.subr.mxu0 0.0
    %1688 = vmatpush1.msra.mxu0 %v1661
    %1689 = vmatprep.subr.mxu0 0.0
    %1690 = vmatpush1.msra.mxu0 %v1662
    %1691 = vmatprep.subr.mxu0 0.0
    %1692 = vmatpush1.msra.mxu0 %v1663
    %1693 = vmatprep.subr.mxu0 0.0
    %1694 = vmatpush1.msra.mxu0 %v1664
    %1695 = vmatprep.subr.mxu0 0.0
    %1696 = vmatpush1.msra.mxu0 %v1665
    %1697 = vmatprep.subr.mxu0 0.0
    %1698 = vmatpush1.msra.mxu0 %v1666
    %1699 = vmatprep.subr.mxu0 0.0
    %1700 = vmatpush1.msra.mxu0 %v1667
    %1701 = vmatprep.subr.mxu0 0.0
    %1702 = vmatpush1.msra.mxu0 %v1668
    %1703 = vmatprep.subr.mxu0 0.0
    %1704 = vmatpush1.msra.mxu0 %v1669
    %1705 = vmatprep.subr.mxu0 0.0
    %1706 = vmatpush1.msra.mxu0 %v1670
    %1707 = vmatprep.subr.mxu0 0.0
    %1708 = vmatpush1.msra.mxu0 0.0
    %1709 = vmatprep.subr.mxu0 0.0
    %1710 = vmatpush1.msra.mxu0 0.0
    %1711 = vmatprep.subr.mxu0 0.0
    %1712 = vmatpush1.msra.mxu0 0.0
    %1713 = vmatprep.subr.mxu0 0.0
    %1714 = vmatpush1.msra.mxu0 0.0
    %1715 = vmatprep.subr.mxu0 0.0
    %1716 = vmatpush1.msra.mxu0 0.0
    %1717 = vmatprep.subr.mxu0 0.0
    %1718 = vmatpush1.msra.mxu0 0.0
    %1719 = vmatprep.subr.mxu0 0.0
    %1720 = vmatpush1.msra.mxu0 0.0
    %1721 = vmatprep.subr.mxu0 0.0
    %1722 = vmatpush1.msra.mxu0 0.0
    %1723 = vmatprep.subr.mxu0 0.0
    %1724 = vmatpush1.msra.mxu0 0.0
    %1725 = vmatprep.subr.mxu0 0.0
    %1726 = vmatpush1.msra.mxu0 0.0
    %1727 = vmatprep.subr.mxu0 0.0
    %1728 = vmatpush1.msra.mxu0 0.0
    %1729 = vmatprep.subr.mxu0 0.0
    %1730 = vmatpush1.msra.mxu0 0.0
    %1731 = vmatprep.subr.mxu0 0.0
    %1732 = vmatpush1.msra.mxu0 0.0
    %1733 = vmatprep.subr.mxu0 0.0
    %1734 = vmatpush1.msra.mxu0 0.0
    %1735 = vmatprep.subr.mxu0 0.0
    %1736 = vmatpush1.msra.mxu0 0.0
    %1737 = vmatprep.subr.mxu0 0.0
    %1738 = vmatpush1.msra.mxu0 0.0
    %1739 = vmatprep.subr.mxu0 0.0
    %1740 = vmatpush1.msra.mxu0 0.0
    %1741 = vmatprep.subr.mxu0 0.0
    %1742 = vmatpush1.msra.mxu0 0.0
    %1743 = vmatprep.subr.mxu0 0.0
    %1744 = vmatpush1.msra.mxu0 0.0
    %1745 = vmatprep.subr.mxu0 0.0
    %1746 = vmatpush1.msra.mxu0 0.0
    %1747 = vmatprep.mubr.f32.mxu0 0.0
    %1748 = vmatmul.mubr.f32.gmra.mrb[0].mxu0 %v1672
    %v1749 = vpop.f32.mrb[0].mxu0
    %v1750 = vadd.f32 0.0, %v1749
    %v1751 = vpop.f32.mrb[0].mxu0
    %1752 = vmatprep.mubr.f32.mxu0 0.0
    %1753 = vmatmul.mubr.f32.gmra.mrb[0].mxu0 %v1675
    %v1754 = vpop.f32.mrb[0].mxu0
    %v1755 = vadd.f32 0.0, %v1754
    %v1756 = vpop.f32.mrb[0].mxu0
    %1757 = vmatprep.mubr.f32.mxu0 0.0
    %1758 = vmatmul.mubr.f32.gmra.mrb[0].mxu0 %v1678
    %v1759 = vpop.f32.mrb[0].mxu0
    %v1760 = vadd.f32 0.0, %v1759
    %v1761 = vpop.f32.mrb[0].mxu0
    %1762 = vmatprep.mubr.f32.mxu0 0.0
    %1763 = vmatmul.mubr.f32.gmra.mrb[0].mxu0 %v1681
    %v1764 = vpop.f32.mrb[0].mxu0
    %v1765 = vadd.f32 0.0, %v1764
    %v1766 = vpop.f32.mrb[0].mxu0
    %1767 = vdwg.mxu0
    %1772 = vrot.lane.b32.xlu0 %v1750, 96
    %v1773 = vpop.permute.xlu0 %1772
    %1774 = vrot.lane.b32.xlu0 %v1755, 96
    %v1775 = vpop.permute.xlu0 %1774
    %1776 = vrot.lane.b32.xlu0 %v1760, 96
    %v1777 = vpop.permute.xlu0 %1776
    %1778 = vrot.lane.b32.xlu0 %v1765, 96
    %v1779 = vpop.permute.xlu0 %1778
    %v1784 = vadd.f32 %v768, %v1773
    %v1785 = vadd.f32 %v773, %v1775
    %v1786 = vadd.f32 %v778, %v1777
    %v1787 = vadd.f32 %v783, %v1779
    %v1788 = vmul.f32 %v1784, %v1526
    %v1789 = vmul.f32 %v1785, %v1528
    %v1790 = vmul.f32 %v1786, %v1530
    %v1791 = vmul.f32 %v1787, %v1532
    %v1792 = vmax.f32 %v1788, 0.0
    %v1793 = vmax.f32 %v1789, 0.0
    %v1794 = vmax.f32 %v1790, 0.0
    %v1795 = vmax.f32 %v1791, 0.0
    %1800 = vrot.lane.b32.xlu0 %v1792, 64
    %v1801 = vpop.permute.xlu0 %1800
    %1802 = vrot.lane.b32.xlu0 %v1793, 64
    %v1803 = vpop.permute.xlu0 %1802
    %1804 = vrot.lane.b32.xlu0 %v1794, 64
    %v1805 = vpop.permute.xlu0 %1804
    %1806 = vrot.lane.b32.xlu0 %v1795, 64
    %v1807 = vpop.permute.xlu0 %1806
    %v1812 = vsel %vm794, %v1543, %v1801
    %v1813 = vsel %vm794, %v1545, %v1803
    %v1814 = vsel %vm794, %v1547, %v1805
    %v1815 = vsel %vm794, %v1549, %v1807
    %v1816 = vadd.f32 %v1812, %v36
    %v1817 = vadd.f32 %v1813, %v37
    %v1818 = vadd.f32 %v1814, %v38
    %v1819 = vadd.f32 %v1815, %v39
    %1824 = vrot.lane.b32.xlu0 %v1816, 64
    %v1825 = vpop.permute.xlu0 %1824
    %1826 = vrot.lane.b32.xlu0 %v1817, 64
    %v1827 = vpop.permute.xlu0 %1826
    %1828 = vrot.lane.b32.xlu0 %v1818, 64
    %v1829 = vpop.permute.xlu0 %1828
    %1830 = vrot.lane.b32.xlu0 %v1819, 64
    %v1831 = vpop.permute.xlu0 %1830
    %v1836 = vsel %vm168, %v1280, %v1825
    %v1837 = vsel %vm168, %v1281, %v1827
    %v1838 = vsel %vm168, %v1282, %v1829
    %v1839 = vsel %vm168, %v1283, %v1831
    %v1840 = vld [vmem:[%s8] sm:$0xff]
    %v1841 = vld [vmem:[%s8 + $0x8] sm:$0xff]
    %v1842 = vld [vmem:[%s8 + $0x10] sm:$0xff]
    %v1843 = vld [vmem:[%s8 + $0x18] sm:$0xff]
    %v1844 = vld [vmem:[%s8 + $0x20] sm:$0xff]
    %v1845 = vld [vmem:[%s8 + $0x28] sm:$0xff]
    %v1846 = vld [vmem:[%s8 + $0x30] sm:$0xff]
    %v1847 = vld [vmem:[%s8 + $0x38] sm:$0xff]
    %v1848 = vld [vmem:[%s8 + $0x40] sm:$0xff]
    %v1849 = vld [vmem:[%s8 + $0x48] sm:$0xff]
    %v1850 = vld [vmem:[%s8 + $0x50] sm:$0xff]
    %v1851 = vld [vmem:[%s8 + $0x58] sm:$0xff]
    %v1852 = vld [vmem:[%s8 + $0x60] sm:$0xff]
    %v1853 = vld [vmem:[%s8 + $0x68] sm:$0xff]
    %v1854 = vld [vmem:[%s8 + $0x70] sm:$0xff]
    %v1855 = vld [vmem:[%s8 + $0x78] sm:$0xff]
    %v1856 = vld [vmem:[%s9] sm:$0x1]
    %v1858 = vlaneseq
    %v1859 = vshrl.u32 %v1858, 7
    %v1860 = vsub.s32 0, %v1859
    %v1861 = vrot.slane %v1856, %v1860
    %1863 = vmatprep.subr.mxu0 0.0
    %1864 = vmatpush1.msra.mxu0 %v1840
    %1865 = vmatprep.subr.mxu0 0.0
    %1866 = vmatpush1.msra.mxu0 %v1841
    %1867 = vmatprep.subr.mxu0 0.0
    %1868 = vmatpush1.msra.mxu0 %v1842
    %1869 = vmatprep.subr.mxu0 0.0
    %1870 = vmatpush1.msra.mxu0 %v1843
    %1871 = vmatprep.subr.mxu0 0.0
    %1872 = vmatpush1.msra.mxu0 %v1844
    %1873 = vmatprep.subr.mxu0 0.0
    %1874 = vmatpush1.msra.mxu0 %v1845
    %1875 = vmatprep.subr.mxu0 0.0
    %1876 = vmatpush1.msra.mxu0 %v1846
    %1877 = vmatprep.subr.mxu0 0.0
    %1878 = vmatpush1.msra.mxu0 %v1847
    %1879 = vmatprep.subr.mxu0 0.0
    %1880 = vmatpush1.msra.mxu0 %v1848
    %1881 = vmatprep.subr.mxu0 0.0
    %1882 = vmatpush1.msra.mxu0 %v1849
    %1883 = vmatprep.subr.mxu0 0.0
    %1884 = vmatpush1.msra.mxu0 %v1850
    %1885 = vmatprep.subr.mxu0 0.0
    %1886 = vmatpush1.msra.mxu0 %v1851
    %1887 = vmatprep.subr.mxu0 0.0
    %1888 = vmatpush1.msra.mxu0 %v1852
    %1889 = vmatprep.subr.mxu0 0.0
    %1890 = vmatpush1.msra.mxu0 %v1853
    %1891 = vmatprep.subr.mxu0 0.0
    %1892 = vmatpush1.msra.mxu0 %v1854
    %1893 = vmatprep.subr.mxu0 0.0
    %1894 = vmatpush1.msra.mxu0 %v1855
    %1895 = vmatprep.subr.mxu0 0.0
    %1896 = vmatpush1.msra.mxu0 0.0
    %1897 = vmatprep.subr.mxu0 0.0
    %1898 = vmatpush1.msra.mxu0 0.0
    %1899 = vmatprep.subr.mxu0 0.0
    %1900 = vmatpush1.msra.mxu0 0.0
    %1901 = vmatprep.subr.mxu0 0.0
    %1902 = vmatpush1.msra.mxu0 0.0
    %1903 = vmatprep.subr.mxu0 0.0
    %1904 = vmatpush1.msra.mxu0 0.0
    %1905 = vmatprep.subr.mxu0 0.0
    %1906 = vmatpush1.msra.mxu0 0.0
    %1907 = vmatprep.subr.mxu0 0.0
    %1908 = vmatpush1.msra.mxu0 0.0
    %1909 = vmatprep.subr.mxu0 0.0
    %1910 = vmatpush1.msra.mxu0 0.0
    %1911 = vmatprep.subr.mxu0 0.0
    %1912 = vmatpush1.msra.mxu0 0.0
    %1913 = vmatprep.subr.mxu0 0.0
    %1914 = vmatpush1.msra.mxu0 0.0
    %1915 = vmatprep.subr.mxu0 0.0
    %1916 = vmatpush1.msra.mxu0 0.0
    %1917 = vmatprep.subr.mxu0 0.0
    %1918 = vmatpush1.msra.mxu0 0.0
    %1919 = vmatprep.subr.mxu0 0.0
    %1920 = vmatpush1.msra.mxu0 0.0
    %1921 = vmatprep.subr.mxu0 0.0
    %1922 = vmatpush1.msra.mxu0 0.0
    %1923 = vmatprep.subr.mxu0 0.0
    %1924 = vmatpush1.msra.mxu0 0.0
    %1925 = vmatprep.subr.mxu0 0.0
    %1926 = vmatpush1.msra.mxu0 0.0
    %1927 = vmatprep.mubr.f32.mxu0 0.0
    %1928 = vmatmul.mubr.f32.gmra.mrb[0].mxu0 %v1836
    %v1929 = vpop.f32.mrb[0].mxu0
    %v1930 = vadd.f32 %v1861, %v1929
    %v1931 = vpop.f32.mrb[0].mxu0
    %1932 = vmatprep.mubr.f32.mxu0 0.0
    %1933 = vmatmul.mubr.f32.gmra.mrb[0].mxu0 %v1837
    %v1934 = vpop.f32.mrb[0].mxu0
    %v1935 = vadd.f32 %v1861, %v1934
    %v1936 = vpop.f32.mrb[0].mxu0
    %1937 = vmatprep.mubr.f32.mxu0 0.0
    %1938 = vmatmul.mubr.f32.gmra.mrb[0].mxu0 %v1838
    %v1939 = vpop.f32.mrb[0].mxu0
    %v1940 = vadd.f32 %v1861, %v1939
    %v1941 = vpop.f32.mrb[0].mxu0
    %1942 = vmatprep.mubr.f32.mxu0 0.0
    %1943 = vmatmul.mubr.f32.gmra.mrb[0].mxu0 %v1839
    %v1944 = vpop.f32.mrb[0].mxu0
    %v1945 = vadd.f32 %v1861, %v1944
    %v1946 = vpop.f32.mrb[0].mxu0
    %1947 = vdwg.mxu0
    %1948 = vst.msk [vmem:[#allocation2] sm:$0xff] %vm168, %v1930
    %1949 = vst.msk [vmem:[#allocation2 + $0x8] sm:$0xff] %vm168, %v1935
    %1950 = vst.msk [vmem:[#allocation2 + $0x10] sm:$0xff] %vm168, %v1940
    %1951 = vst.msk [vmem:[#allocation2 + $0x18] sm:$0xff] %vm168, %v1945
    // Predicated region
    $region42: #{multi_graph_convolution.1} parent=1 // pred_check
      _
    $region43: #{multi_graph_convolution.1} parent=1 // pred_check_branch
      %1953 = sbr.rel (0) target = $region45
    $region44: #{multi_graph_convolution.1} parent=1 // pred_region
      %s1955 = ssub.s32 512, 512
      %1956 = vsyncadd [#allocation3], %s1955
      %s1957 = sshll.u32 [#allocation2], 4
      %s1958 = int_to_ptr.vmem [resolvable:$true] %s1957
      %1963 = dma.vmem_to_hbm [thread:$0]  %s1958, 512, %s10, [#allocation3], 128, 128, 8
    $region45: #{multi_graph_convolution.1} parent=1 // pred_fallthru
      _
    // Predicated region
    $region46: #{multi_graph_convolution.1} parent=1 // pred_check
      _
    $region47: #{multi_graph_convolution.1} parent=1 // pred_check_branch
      %1965 = sbr.rel (0) target = $region49
    $region48: #{multi_graph_convolution.1} parent=1 // pred_region
      %1966 = dma.done [#allocation3], 512
    $region49: #{multi_graph_convolution.1} parent=1 // pred_fallthru
      _
    %1967 = vsyncpa [#allocation3], 1

</llo_original>
